<compile_context>
chip_gen: v5e
topology: v5e:2x2
jax: 0.10.0
libtpu: 0.0.40
codegen_flags: <defaults>
</compile_context>

<pallas_src>
import functools
import numpy as np
import jax
import jax.numpy as jnp
from jax.experimental import pallas as pl
from jax.experimental.pallas import tpu as pltpu


# ----------------------------------------------------------------------------
# Fused kernel: pointwise 1x1 conv (+folded BN)  ->  H-padded VMEM scratch  ->
#               depthwise kxk conv (+folded BN) + ReLU
# One grid step = one (batch element, channel tile).
# ----------------------------------------------------------------------------
def _light_conv_kernel(x_ref, w1_ref, b1_ref, wd_ref, b2_ref, o_ref, ypad_ref, *, k):
    # Block shapes:
    #   x_ref:    (1, H, W, C1)   f32
    #   w1_ref:   (C1, TC)        f32  -- BN1 scale already folded in
    #   b1_ref:   (1, TC)         f32  -- BN1 shift
    #   wd_ref:   (k, k, TC)      cdt  -- BN2 scale already folded in
    #   b2_ref:   (1, TC)         f32  -- BN2 shift
    #   o_ref:    (1, H, W, TC)
    #   ypad_ref: (H + 2p, W, TC) cdt VMEM scratch (H-padded intermediate)
    _, H, W, C1 = x_ref.shape
    TC = o_ref.shape[3]
    p = k // 2
    cdt = ypad_ref.dtype

    # --- stage 1: 1x1 conv + folded BN (MXU); result stays in VMEM ----------
    # The H*W merge is a free re-tiling when W % 8 == 0 (the common case);
    # otherwise Mosaic materialises one relayout copy.
    x2d = x_ref[0].reshape(H * W, C1)
    y = jnp.dot(x2d, w1_ref[...], preferred_element_type=jnp.float32) + b1_ref[...]

    # Zero only the H halo rows (top p / bottom p).  The interior is rewritten
    # in full every step and there is no W halo, so this store and the interior
    # store below are fully aligned (no masked stores, no whole-slab memset).
    if p > 0:
        ypad_ref[0:p, :, :] = jnp.zeros((p, W, TC), cdt)
        ypad_ref[p + H:2 * p + H, :, :] = jnp.zeros((p, W, TC), cdt)
    ypad_ref[p:p + H, :, :] = y.reshape(H, W, TC).astype(cdt)

    # --- stage 2: depthwise kxk conv + folded BN + ReLU (VALU) ---------------
    # k hoisted row loads (leading-dim slices, layout-free).  Restructured per
    # column offset dx: combine the k dy-taps first, then apply the W shift
    # once (k shifts total instead of k^2 misaligned reads).  The zero columns
    # inserted at the edges reproduce the 'same' padding in W.
    rows = [ypad_ref[dy:dy + H, :, :] for dy in range(k)]
    acc = None
    for dx in range(k):
        part = rows[0] * wd_ref[0, dx, :]
        for dy in range(1, k):
            part = part + rows[dy] * wd_ref[dy, dx, :]
        s = dx - p                       # W shift for this column offset
        if s > 0:                        # shift left, zero right edge
            part = jnp.concatenate(
                [part[:, s:, :], jnp.zeros((H, s, TC), part.dtype)], axis=1)
        elif s < 0:                      # shift right, zero left edge
            part = jnp.concatenate(
                [jnp.zeros((H, -s, TC), part.dtype), part[:, :s, :]], axis=1)
        contrib = part.astype(jnp.float32)
        acc = contrib if acc is None else acc + contrib

    o_ref[0] = jnp.maximum(acc + b2_ref[0, :], 0.0).astype(o_ref.dtype)


# ----------------------------------------------------------------------------
# Wrapper helpers
# ----------------------------------------------------------------------------
def _vmem_limit_bytes():
    """Generation-aware scoped-VMEM limit, leaving headroom for the compiler."""
    try:
        cap = int(pltpu.get_tpu_info().vmem_capacity_bytes)
    except Exception:                      # conservative fallback
        cap = 64 * 1024 * 1024
    # ~48 MiB on v7x (64 MiB physical per TC), ~96 MiB on 128 MiB v5e/v6e.
    return max(32 * 1024 * 1024, min((cap * 3) // 4, 100 * 1024 * 1024))


def _step_vmem_bytes(H, W, C1, tc, k, cdt_bytes):
    """Rough per-grid-step VMEM estimate (double-buffered blocks + scratch)."""
    p = k // 2
    x_blk = H * W * C1 * 4
    o_blk = H * W * tc * 4
    w_blk = (C1 * tc + 2 * tc + k * k * tc) * 4
    ypad = (H + 2 * p) * W * tc * cdt_bytes
    return 2 * (x_blk + o_blk + w_blk) + ypad


def _pick_channel_tile(c2, H, W, c1, k, cdt_bytes, vmem_budget):
    """Largest lane-friendly channel tile that divides c2 and fits the budget."""
    candidates = [t for t in (256, 128) if c2 % t == 0]
    start = (min(c2, 120) // 8) * 8
    candidates += [t for t in range(start, 0, -8) if c2 % t == 0]
    if c2 not in candidates:
        candidates.append(c2)
    for t in candidates:
        if _step_vmem_bytes(H, W, c1, t, k, cdt_bytes) <= vmem_budget:
            return t
    return candidates[-1]


def light_conv_forward(x_nchw, params, *, k, compute_dtype=jnp.float32):
    """LightConv forward.  x_nchw: (N, C1, H, W) -> (N, C2, H, W).

    compute_dtype controls the depthwise stage-2 tap precision: jnp.bfloat16 is
    the fast path on v6e/v7x (2x VALU, half the scratch); keep float32 on v5e
    or when bit-exact results are required.
    """
    assert k % 2 == 1, "'same' depthwise padding implemented for odd k only"
    p = k // 2

    # NCHW -> NHWC (layout glue at the module boundary)
    x = jnp.transpose(x_nchw, (0, 2, 3, 1))
    N, H, W, C1 = x.shape
    C2 = params["w1"].shape[1]

    # Fold eval-mode BN scales into the conv weights; keep shifts as biases.
    w1f = (params["w1"] * params["scale1"]).astype(jnp.float32)        # (C1, C2)
    wdf = (params["wd"] * params["scale2"][0]).astype(compute_dtype)   # (k, k, C2)
    b1 = params["shift1"].astype(jnp.float32)                          # (1, C2)
    b2 = params["shift2"].astype(jnp.float32)                          # (1, C2)

    vmem_limit = _vmem_limit_bytes()
    cdt_bytes = jnp.dtype(compute_dtype).itemsize
    tc = _pick_channel_tile(C2, H, W, C1, k, cdt_bytes, (vmem_limit * 3) // 5)
    grid = (N, C2 // tc)

    kernel = functools.partial(_light_conv_kernel, k=k)
    out_nhwc = pl.pallas_call(
        kernel,
        out_shape=jax.ShapeDtypeStruct((N, H, W, C2), x.dtype),
        grid_spec=pltpu.PrefetchScalarGridSpec(
            num_scalar_prefetch=0,
            grid=grid,                                    # (batch, channel-tile)
            in_specs=[
                # x block is identical across the inner c axis -> fetched once
                # per batch element by the pipeline.
                pl.BlockSpec((1, H, W, C1), lambda n, c: (n, 0, 0, 0)),
                pl.BlockSpec((C1, tc), lambda n, c: (0, c)),
                pl.BlockSpec((1, tc), lambda n, c: (0, c)),
                pl.BlockSpec((k, k, tc), lambda n, c: (0, 0, c)),
                pl.BlockSpec((1, tc), lambda n, c: (0, c)),
            ],
            out_specs=pl.BlockSpec((1, H, W, tc), lambda n, c: (n, 0, 0, c)),
            scratch_shapes=[
                pltpu.VMEM((H + 2 * p, W, tc), compute_dtype),
            ],
        ),
        compiler_params=pltpu.CompilerParams(
            # Batch outermost so megacore sharding splits on n (no duplicated
            # x DMA across TensorCores).
            dimension_semantics=("parallel", "parallel"),
            vmem_limit_bytes=vmem_limit,
        ),
    )(x, w1f, b1, wdf, b2)

    # NHWC -> NCHW
    return jnp.transpose(out_nhwc, (0, 3, 1, 2))


# ----------------------------------------------------------------------------
# Pure-JAX reference (same math, unfolded BN) for verification
# ----------------------------------------------------------------------------
def light_conv_reference(x_nchw, params, *, k):
    x = jnp.transpose(x_nchw, (0, 2, 3, 1))
    y = jnp.einsum("nhwc,cd->nhwd", x, params["w1"])
    y = y * params["scale1"][0] + params["shift1"][0]
    p = k // 2
    yp = jnp.pad(y, ((0, 0), (p, p), (p, p), (0, 0)))
    N, H, W, C2 = y.shape
    acc = jnp.zeros_like(y)
    for dy in range(k):
        for dx in range(k):
            acc = acc + yp[:, dy:dy + H, dx:dx + W, :] * params["wd"][dy, dx, :]
    z = jnp.maximum(acc * params["scale2"][0] + params["shift2"][0], 0.0)
    return jnp.transpose(z, (0, 3, 1, 2))


if __name__ == "__main__":
    # Shapes: batch=2, c1=4, c2=8, H=W=16, k=3
    N, C1, C2, H, W, K = 2, 4, 8, 16, 16, 3
    key = jax.random.PRNGKey(0)
    kx, kw1, kwd, kg1, kb1, km1, kv1, kg2, kb2, km2, kv2 = jax.random.split(key, 11)

    x = jax.random.normal(kx, (N, C1, H, W), dtype=jnp.float32)

    # conv1 weight: torch (C2, C1, 1, 1) -> kernel layout (C1, C2)
    w1_torch = jax.random.normal(kw1, (C2, C1, 1, 1), dtype=jnp.float32) * 0.1
    w1 = jnp.transpose(w1_torch[:, :, 0, 0], (1, 0))

    # depthwise weight: torch (C2, 1, K, K) -> kernel layout (K, K, C2)
    wd_torch = jax.random.normal(kwd, (C2, 1, K, K), dtype=jnp.float32) * 0.1
    wd = jnp.transpose(wd_torch[:, 0, :, :], (1, 2, 0))

    eps = 1e-5
    # BN1 (eval-mode) params
    g1 = 1.0 + 0.1 * jax.random.normal(kg1, (C2,), dtype=jnp.float32)
    b1 = 0.1 * jax.random.normal(kb1, (C2,), dtype=jnp.float32)
    m1 = 0.1 * jax.random.normal(km1, (C2,), dtype=jnp.float32)
    v1 = jnp.abs(1.0 + 0.1 * jax.random.normal(kv1, (C2,), dtype=jnp.float32))
    scale1 = (g1 / jnp.sqrt(v1 + eps)).reshape(1, C2)
    shift1 = (b1 - m1 * g1 / jnp.sqrt(v1 + eps)).reshape(1, C2)

    # BN2 (eval-mode) params
    g2 = 1.0 + 0.1 * jax.random.normal(kg2, (C2,), dtype=jnp.float32)
    b2 = 0.1 * jax.random.normal(kb2, (C2,), dtype=jnp.float32)
    m2 = 0.1 * jax.random.normal(km2, (C2,), dtype=jnp.float32)
    v2 = jnp.abs(1.0 + 0.1 * jax.random.normal(kv2, (C2,), dtype=jnp.float32))
    scale2 = (g2 / jnp.sqrt(v2 + eps)).reshape(1, C2)
    shift2 = (b2 - m2 * g2 / jnp.sqrt(v2 + eps)).reshape(1, C2)

    params = dict(w1=w1, scale1=scale1, shift1=shift1,
                  wd=wd, scale2=scale2, shift2=shift2)

    ref = light_conv_reference(x, params, k=K)

    # f32 stage-2 path: must match the reference to float precision.
    out = jax.jit(functools.partial(light_conv_forward, k=K))(x, params)
    out = jax.block_until_ready(out)
    np.testing.assert_allclose(np.asarray(out), np.asarray(ref), rtol=1e-5, atol=1e-5)
    assert out.shape == (N, C2, H, W)

    # bf16 stage-2 path (the v6e/v7x fast path): same semantics, loose tolerance.
    out_bf16 = jax.jit(functools.partial(light_conv_forward, k=K,
                                         compute_dtype=jnp.bfloat16))(x, params)
    out_bf16 = jax.block_until_ready(out_bf16)
    np.testing.assert_allclose(np.asarray(out_bf16), np.asarray(ref),
                               rtol=2e-2, atol=2e-2)

    print("KERNEL_OK")
</pallas_src>

<mosaic_0001>
module attributes {stable_mosaic.version = 11 : i64} {
  func.func @_light_conv_kernel(%arg0: i32, %arg1: i32, %arg2: memref<1x16x16x4xf32, #tpu.memory_space<vmem>>, %arg3: memref<4x8xf32, #tpu.memory_space<vmem>>, %arg4: memref<1x8xf32, #tpu.memory_space<vmem>>, %arg5: memref<3x3x8xf32, #tpu.memory_space<vmem>>, %arg6: memref<1x8xf32, #tpu.memory_space<vmem>>, %arg7: memref<1x16x16x8xf32, #tpu.memory_space<vmem>>, %arg8: memref<18x16x8xf32, #tpu.memory_space<vmem>>) attributes {dimension_semantics = [#tpu.dimension_semantics<parallel>, #tpu.dimension_semantics<parallel>], iteration_bounds = array<i64: 2, 1>, scalar_prefetch = 0 : i64, scratch_operands = 1 : i64, tpu.core_type = #tpu.core_type<tc>, window_params = [{transform_indices = @transform_0, window_bounds = array<i64: 1, 16, 16, 4>}, {transform_indices = @transform_1, window_bounds = array<i64: 4, 8>}, {transform_indices = @transform_2, window_bounds = array<i64: 1, 8>}, {transform_indices = @transform_3, window_bounds = array<i64: 3, 3, 8>}, {transform_indices = @transform_4, window_bounds = array<i64: 1, 8>}, {transform_indices = @transform_5, window_bounds = array<i64: 1, 16, 16, 8>}]} {
    %c0 = arith.constant 0 : index
    %c0_0 = arith.constant 0 : index
    %c0_1 = arith.constant 0 : index
    %c0_2 = arith.constant 0 : index
    %0 = vector.load %arg2[%c0, %c0_0, %c0_1, %c0_2] : memref<1x16x16x4xf32, #tpu.memory_space<vmem>>, vector<1x16x16x4xf32>
    %1 = vector.shape_cast %0 : vector<1x16x16x4xf32> to vector<16x16x4xf32>
    %2 = vector.shape_cast %1 : vector<16x16x4xf32> to vector<256x4xf32>
    %c0_3 = arith.constant 0 : index
    %c0_4 = arith.constant 0 : index
    %3 = vector.load %arg3[%c0_3, %c0_4] : memref<4x8xf32, #tpu.memory_space<vmem>>, vector<4x8xf32>
    %cst = arith.constant dense<0.000000e+00> : vector<256x8xf32>
    %4 = tpu.matmul %2, %3, %cst {dimension_numbers = #tpu.dot_dimension_numbers<[1], [0], [0], [1], [0, 0, 1, 1], [], []>} : vector<256x4xf32>, vector<4x8xf32>, vector<256x8xf32> -> vector<256x8xf32>
    %c0_5 = arith.constant 0 : index
    %c0_6 = arith.constant 0 : index
    %5 = vector.load %arg4[%c0_5, %c0_6] : memref<1x8xf32, #tpu.memory_space<vmem>>, vector<1x8xf32>
    %6 = vector.broadcast %5 : vector<1x8xf32> to vector<256x8xf32>
    %7 = arith.addf %4, %6 : vector<256x8xf32>
    %cst_7 = arith.constant 0.000000e+00 : f32
    %8 = vector.broadcast %cst_7 : f32 to vector<1x16x8xf32>
    %c0_8 = arith.constant 0 : index
    %c0_9 = arith.constant 0 : index
    %c0_10 = arith.constant 0 : index
    %9 = vector.load %arg8[%c0_8, %c0_9, %c0_10] : memref<18x16x8xf32, #tpu.memory_space<vmem>>, vector<1x16x8xf32>
    tpu.vector_store %arg8[%c0_8, %c0_9, %c0_10], %8 {strides = array<i32>} : memref<18x16x8xf32, #tpu.memory_space<vmem>>, vector<1x16x8xf32>,
    %cst_11 = arith.constant 0.000000e+00 : f32
    %10 = vector.broadcast %cst_11 : f32 to vector<1x16x8xf32>
    %c17 = arith.constant 17 : index
    %c0_12 = arith.constant 0 : index
    %c0_13 = arith.constant 0 : index
    %11 = vector.load %arg8[%c17, %c0_12, %c0_13] : memref<18x16x8xf32, #tpu.memory_space<vmem>>, vector<1x16x8xf32>
    tpu.vector_store %arg8[%c17, %c0_12, %c0_13], %10 {strides = array<i32>} : memref<18x16x8xf32, #tpu.memory_space<vmem>>, vector<1x16x8xf32>,
    %12 = vector.shape_cast %7 : vector<256x8xf32> to vector<16x16x8xf32>
    %c1 = arith.constant 1 : index
    %c0_14 = arith.constant 0 : index
    %c0_15 = arith.constant 0 : index
    %13 = vector.load %arg8[%c1, %c0_14, %c0_15] : memref<18x16x8xf32, #tpu.memory_space<vmem>>, vector<16x16x8xf32>
    tpu.vector_store %arg8[%c1, %c0_14, %c0_15], %12 {strides = array<i32>} : memref<18x16x8xf32, #tpu.memory_space<vmem>>, vector<16x16x8xf32>,
    %c0_16 = arith.constant 0 : index
    %c0_17 = arith.constant 0 : index
    %c0_18 = arith.constant 0 : index
    %14 = vector.load %arg8[%c0_16, %c0_17, %c0_18] : memref<18x16x8xf32, #tpu.memory_space<vmem>>, vector<16x16x8xf32>
    %c1_19 = arith.constant 1 : index
    %c0_20 = arith.constant 0 : index
    %c0_21 = arith.constant 0 : index
    %15 = vector.load %arg8[%c1_19, %c0_20, %c0_21] : memref<18x16x8xf32, #tpu.memory_space<vmem>>, vector<16x16x8xf32>
    %c2 = arith.constant 2 : index
    %c0_22 = arith.constant 0 : index
    %c0_23 = arith.constant 0 : index
    %16 = vector.load %arg8[%c2, %c0_22, %c0_23] : memref<18x16x8xf32, #tpu.memory_space<vmem>>, vector<16x16x8xf32>
    %c0_24 = arith.constant 0 : index
    %c0_25 = arith.constant 0 : index
    %c0_26 = arith.constant 0 : index
    %17 = vector.load %arg5[%c0_24, %c0_25, %c0_26] : memref<3x3x8xf32, #tpu.memory_space<vmem>>, vector<1x1x8xf32>
    %18 = vector.shape_cast %17 : vector<1x1x8xf32> to vector<8xf32>
    %19 = vector.shape_cast %18 : vector<8xf32> to vector<1x1x8xf32>
    %20 = vector.broadcast %19 : vector<1x1x8xf32> to vector<16x16x8xf32>
    %21 = arith.mulf %14, %20 : vector<16x16x8xf32>
    %c1_27 = arith.constant 1 : index
    %c0_28 = arith.constant 0 : index
    %c0_29 = arith.constant 0 : index
    %22 = vector.load %arg5[%c1_27, %c0_28, %c0_29] : memref<3x3x8xf32, #tpu.memory_space<vmem>>, vector<1x1x8xf32>
    %23 = vector.shape_cast %22 : vector<1x1x8xf32> to vector<8xf32>
    %24 = vector.shape_cast %23 : vector<8xf32> to vector<1x1x8xf32>
    %25 = vector.broadcast %24 : vector<1x1x8xf32> to vector<16x16x8xf32>
    %26 = arith.mulf %15, %25 : vector<16x16x8xf32>
    %27 = arith.addf %21, %26 : vector<16x16x8xf32>
    %c2_30 = arith.constant 2 : index
    %c0_31 = arith.constant 0 : index
    %c0_32 = arith.constant 0 : index
    %28 = vector.load %arg5[%c2_30, %c0_31, %c0_32] : memref<3x3x8xf32, #tpu.memory_space<vmem>>, vector<1x1x8xf32>
    %29 = vector.shape_cast %28 : vector<1x1x8xf32> to vector<8xf32>
    %30 = vector.shape_cast %29 : vector<8xf32> to vector<1x1x8xf32>
    %31 = vector.broadcast %30 : vector<1x1x8xf32> to vector<16x16x8xf32>
    %32 = arith.mulf %16, %31 : vector<16x16x8xf32>
    %33 = arith.addf %27, %32 : vector<16x16x8xf32>
    %cst_33 = arith.constant 0.000000e+00 : f32
    %34 = vector.broadcast %cst_33 : f32 to vector<16x1x8xf32>
    %35 = vector.extract_strided_slice %33 {offsets = [0, 0, 0], sizes = [16, 15, 8], strides = [1, 1, 1]} : vector<16x16x8xf32> to vector<16x15x8xf32>
    %36 = tpu.concatenate %34, %35 in 1 : vector<16x1x8xf32>, vector<16x15x8xf32> -> vector<16x16x8xf32>
    %c0_34 = arith.constant 0 : index
    %c1_35 = arith.constant 1 : index
    %c0_36 = arith.constant 0 : index
    %37 = vector.load %arg5[%c0_34, %c1_35, %c0_36] : memref<3x3x8xf32, #tpu.memory_space<vmem>>, vector<1x1x8xf32>
    %38 = vector.shape_cast %37 : vector<1x1x8xf32> to vector<8xf32>
    %39 = vector.shape_cast %38 : vector<8xf32> to vector<1x1x8xf32>
    %40 = vector.broadcast %39 : vector<1x1x8xf32> to vector<16x16x8xf32>
    %41 = arith.mulf %14, %40 : vector<16x16x8xf32>
    %c1_37 = arith.constant 1 : index
    %c1_38 = arith.constant 1 : index
    %c0_39 = arith.constant 0 : index
    %42 = vector.load %arg5[%c1_37, %c1_38, %c0_39] : memref<3x3x8xf32, #tpu.memory_space<vmem>>, vector<1x1x8xf32>
    %43 = vector.shape_cast %42 : vector<1x1x8xf32> to vector<8xf32>
    %44 = vector.shape_cast %43 : vector<8xf32> to vector<1x1x8xf32>
    %45 = vector.broadcast %44 : vector<1x1x8xf32> to vector<16x16x8xf32>
    %46 = arith.mulf %15, %45 : vector<16x16x8xf32>
    %47 = arith.addf %41, %46 : vector<16x16x8xf32>
    %c2_40 = arith.constant 2 : index
    %c1_41 = arith.constant 1 : index
    %c0_42 = arith.constant 0 : index
    %48 = vector.load %arg5[%c2_40, %c1_41, %c0_42] : memref<3x3x8xf32, #tpu.memory_space<vmem>>, vector<1x1x8xf32>
    %49 = vector.shape_cast %48 : vector<1x1x8xf32> to vector<8xf32>
    %50 = vector.shape_cast %49 : vector<8xf32> to vector<1x1x8xf32>
    %51 = vector.broadcast %50 : vector<1x1x8xf32> to vector<16x16x8xf32>
    %52 = arith.mulf %16, %51 : vector<16x16x8xf32>
    %53 = arith.addf %47, %52 : vector<16x16x8xf32>
    %54 = arith.addf %36, %53 : vector<16x16x8xf32>
    %c0_43 = arith.constant 0 : index
    %c2_44 = arith.constant 2 : index
    %c0_45 = arith.constant 0 : index
    %55 = vector.load %arg5[%c0_43, %c2_44, %c0_45] : memref<3x3x8xf32, #tpu.memory_space<vmem>>, vector<1x1x8xf32>
    %56 = vector.shape_cast %55 : vector<1x1x8xf32> to vector<8xf32>
    %57 = vector.shape_cast %56 : vector<8xf32> to vector<1x1x8xf32>
    %58 = vector.broadcast %57 : vector<1x1x8xf32> to vector<16x16x8xf32>
    %59 = arith.mulf %14, %58 : vector<16x16x8xf32>
    %c1_46 = arith.constant 1 : index
    %c2_47 = arith.constant 2 : index
    %c0_48 = arith.constant 0 : index
    %60 = vector.load %arg5[%c1_46, %c2_47, %c0_48] : memref<3x3x8xf32, #tpu.memory_space<vmem>>, vector<1x1x8xf32>
    %61 = vector.shape_cast %60 : vector<1x1x8xf32> to vector<8xf32>
    %62 = vector.shape_cast %61 : vector<8xf32> to vector<1x1x8xf32>
    %63 = vector.broadcast %62 : vector<1x1x8xf32> to vector<16x16x8xf32>
    %64 = arith.mulf %15, %63 : vector<16x16x8xf32>
    %65 = arith.addf %59, %64 : vector<16x16x8xf32>
    %c2_49 = arith.constant 2 : index
    %c2_50 = arith.constant 2 : index
    %c0_51 = arith.constant 0 : index
    %66 = vector.load %arg5[%c2_49, %c2_50, %c0_51] : memref<3x3x8xf32, #tpu.memory_space<vmem>>, vector<1x1x8xf32>
    %67 = vector.shape_cast %66 : vector<1x1x8xf32> to vector<8xf32>
    %68 = vector.shape_cast %67 : vector<8xf32> to vector<1x1x8xf32>
    %69 = vector.broadcast %68 : vector<1x1x8xf32> to vector<16x16x8xf32>
    %70 = arith.mulf %16, %69 : vector<16x16x8xf32>
    %71 = arith.addf %65, %70 : vector<16x16x8xf32>
    %72 = vector.extract_strided_slice %71 {offsets = [0, 1, 0], sizes = [16, 15, 8], strides = [1, 1, 1]} : vector<16x16x8xf32> to vector<16x15x8xf32>
    %cst_52 = arith.constant 0.000000e+00 : f32
    %73 = vector.broadcast %cst_52 : f32 to vector<16x1x8xf32>
    %74 = tpu.concatenate %72, %73 in 1 : vector<16x15x8xf32>, vector<16x1x8xf32> -> vector<16x16x8xf32>
    %75 = arith.addf %54, %74 : vector<16x16x8xf32>
    %c0_53 = arith.constant 0 : index
    %c0_54 = arith.constant 0 : index
    %76 = vector.load %arg6[%c0_53, %c0_54] : memref<1x8xf32, #tpu.memory_space<vmem>>, vector<1x8xf32>
    %77 = vector.shape_cast %76 : vector<1x8xf32> to vector<8xf32>
    %78 = vector.shape_cast %77 : vector<8xf32> to vector<1x1x8xf32>
    %79 = vector.broadcast %78 : vector<1x1x8xf32> to vector<16x16x8xf32>
    %80 = arith.addf %75, %79 : vector<16x16x8xf32>
    %cst_55 = arith.constant 0.000000e+00 : f32
    %81 = vector.broadcast %cst_55 : f32 to vector<16x16x8xf32>
    %82 = arith.maximumf %80, %81 : vector<16x16x8xf32>
    %c0_56 = arith.constant 0 : index
    %c0_57 = arith.constant 0 : index
    %c0_58 = arith.constant 0 : index
    %c0_59 = arith.constant 0 : index
    %83 = vector.load %arg7[%c0_56, %c0_57, %c0_58, %c0_59] : memref<1x16x16x8xf32, #tpu.memory_space<vmem>>, vector<1x16x16x8xf32>
    %84 = vector.shape_cast %83 : vector<1x16x16x8xf32> to vector<16x16x8xf32>
    %85 = vector.shape_cast %82 : vector<16x16x8xf32> to vector<1x16x16x8xf32>
    tpu.vector_store %arg7[%c0_56, %c0_57, %c0_58, %c0_59], %85 {strides = array<i32>} : memref<1x16x16x8xf32, #tpu.memory_space<vmem>>, vector<1x16x16x8xf32>,
    return
  }
  func.func @transform_0(%arg0: i32, %arg1: i32) -> (i32, i32, i32, i32) {
    %c0_i32 = arith.constant 0 : i32
    %c0_i32_0 = arith.constant 0 : i32
    %c0_i32_1 = arith.constant 0 : i32
    %c0_i32_2 = arith.constant 0 : i32
    return %arg0, %c0_i32, %c0_i32_0, %c0_i32_1 : i32, i32, i32, i32
  }
  func.func @transform_1(%arg0: i32, %arg1: i32) -> (i32, i32) {
    %c0_i32 = arith.constant 0 : i32
    %c0_i32_0 = arith.constant 0 : i32
    return %c0_i32, %arg1 : i32, i32
  }
  func.func @transform_2(%arg0: i32, %arg1: i32) -> (i32, i32) {
    %c0_i32 = arith.constant 0 : i32
    %c0_i32_0 = arith.constant 0 : i32
    return %c0_i32, %arg1 : i32, i32
  }
  func.func @transform_3(%arg0: i32, %arg1: i32) -> (i32, i32, i32) {
    %c0_i32 = arith.constant 0 : i32
    %c0_i32_0 = arith.constant 0 : i32
    %c0_i32_1 = arith.constant 0 : i32
    return %c0_i32, %c0_i32_0, %arg1 : i32, i32, i32
  }
  func.func @transform_4(%arg0: i32, %arg1: i32) -> (i32, i32) {
    %c0_i32 = arith.constant 0 : i32
    %c0_i32_0 = arith.constant 0 : i32
    return %c0_i32, %arg1 : i32, i32
  }
  func.func @transform_5(%arg0: i32, %arg1: i32) -> (i32, i32, i32, i32) {
    %c0_i32 = arith.constant 0 : i32
    %c0_i32_0 = arith.constant 0 : i32
    %c0_i32_1 = arith.constant 0 : i32
    return %arg0, %c0_i32, %c0_i32_0, %arg1 : i32, i32, i32, i32
  }
}

</mosaic_0001>

<llo_original>
// kernel: light_conv_forward.1
$region0: #{light_conv_forward.1}
  #allocation0 [shape = 'u32[]', space=smem, size = 0x4, offset = 0x4, fixed_abs, tag = 'smem constant byte address 0x4 - core index']
  #allocation1 [shape = 'u32[72,128]{1,0:T(1,128)}', space=vmem, size = 0x9000, scoped, tag = 'internal scratch']
  #allocation2 [shape = 'f32[18,16,8]{2,1,0:T(8,128)}', space=vmem, size = 0x24000, scoped, tag = 'scratch operand']
  %s0 = inlined_call_operand.vmem [shape: f32[2,16,16,4], index: 0, kind: input, shape index: {}]
  %s1 = inlined_call_operand.vmem [shape: f32[4,8], index: 1, kind: input, shape index: {}]
  %s2 = inlined_call_operand.vmem [shape: f32[1,8], index: 2, kind: input, shape index: {}]
  %s3 = inlined_call_operand.vmem [shape: f32[3,3,8], index: 3, kind: input, shape index: {}]
  %s4 = inlined_call_operand.vmem [shape: f32[1,8], index: 4, kind: input, shape index: {}]
  %s5 = inlined_call_operand.vmem [shape: f32[2,16,16,8], index: 5, kind: output, shape index: {}]
  %s6 = sld [smem:[#allocation0]]
  $region53: #{light_conv_forward.1} parent=0
    _
  %s8 = ssub.s32 1, %s6
  %s9 = scalar_select 0, %s8, %s6
  loop: start=0, step=1, limit=4
  $region2: #{light_conv_forward.1} parent=0 // loop_pre_header
    _
  $region3: #{light_conv_forward.1} parent=0 // loop_header
    %s11 = sphi 0, %s15
    %p12 = scmp.ge.s32.totalorder %s11, 4
    %s18 = sphi 0, %s30
    %s19 = sphi 0, %s26
    %s20 = sphi 0, %s18
    %s21 = sphi 0, %s19
    %s22 = sphi 0, %s20
    %s23 = sphi 0, %s21
    %s33 = sphi 0, %s35
    %s36 = sphi 0, %s33
    %s37 = sphi 0, %s36
    %s53 = sphi 0, %s37
    %s59 = sphi 0, %s61
    %s62 = sphi 0, %s59
    %s63 = sphi 0, %s62
    %s79 = sphi 0, %s63
    %s85 = sphi 0, %s87
    %s88 = sphi 0, %s85
    %s89 = sphi 0, %s88
    %s105 = sphi 0, %s89
    %s111 = sphi 0, %s113
    %s114 = sphi 0, %s111
    %s115 = sphi 0, %s114
    %s131 = sphi 0, %s115
    %s137 = sphi 0, %s139
    %s140 = sphi 0, %s137
    %s141 = sphi 0, %s140
    %s157 = sphi 0, %s141
    %s165 = sphi 0, %s167
    %s168 = sphi 0, %s165
    %s169 = sphi 0, %s168
    %s185 = sphi 0, %s169
  $region4: #{light_conv_forward.1} parent=0 // loop_header_branch
    %14 = sbr.rel (%p12) target = $region8
  $region5: #{light_conv_forward.1} parent=0 // loop_body
    %s16 = ssub.s32 %s11, 1
    %s17 = ssub.s32 %s11, 2
    %s24 = sadd.s32 1, %s19
    %p25 = scmp.ge.s32.totalorder %s24, 1
    %s26 = scalar_select %p25, 0, %s24
    %s27 = sadd.s32 1, %s18
    %s28 = scalar_select %p25, %s27, %s18
    %p29 = scmp.ge.s32.totalorder %s28, 2
    %s30 = scalar_select %p29, 0, %s28
    %s31 = ssub.s32 %s18, %s30
    %p32 = scmp.eq.s32.totalorder %s31, 0
    %s34 = sadd.s32 %s33, 1
    %s35 = scalar_select %p32, %s33, %s34
    %p38 = pneg %p32
    %p39 = scmp.eq.s32.totalorder %s11, 1
    %p40 = por %p38, %p39
    %p41 = scmp.ne.s32.totalorder %s33, %s36
    %p42 = scmp.eq.s32.totalorder %s11, 0
    %p43 = por %p41, %p42
    %p44 = scmp.ne.s32.totalorder %s33, %s36
    %p45 = scmp.eq.s32.totalorder %s16, 1
    %p46 = por %p44, %p45
    %p47 = scmp.ne.s32.totalorder %s36, %s37
    %p48 = scmp.eq.s32.totalorder %s16, 0
    %p49 = por %p47, %p48
    %p50 = scmp.ne.s32.totalorder %s36, %s37
    %p51 = scmp.eq.s32.totalorder %s17, 1
    %p52 = por %p50, %p51
    %p54 = scmp.ne.s32.totalorder %s37, %s53
    %p55 = scmp.eq.s32.totalorder %s17, 0
    %p56 = por %p54, %p55
    %s57 = ssub.s32 %s19, %s26
    %p58 = scmp.eq.s32.totalorder %s57, 0
    %s60 = sadd.s32 %s59, 1
    %s61 = scalar_select %p58, %s59, %s60
    %p64 = pneg %p58
    %p65 = scmp.eq.s32.totalorder %s11, 1
    %p66 = por %p64, %p65
    %p67 = scmp.ne.s32.totalorder %s59, %s62
    %p68 = scmp.eq.s32.totalorder %s11, 0
    %p69 = por %p67, %p68
    %p70 = scmp.ne.s32.totalorder %s59, %s62
    %p71 = scmp.eq.s32.totalorder %s16, 1
    %p72 = por %p70, %p71
    %p73 = scmp.ne.s32.totalorder %s62, %s63
    %p74 = scmp.eq.s32.totalorder %s16, 0
    %p75 = por %p73, %p74
    %p76 = scmp.ne.s32.totalorder %s62, %s63
    %p77 = scmp.eq.s32.totalorder %s17, 1
    %p78 = por %p76, %p77
    %p80 = scmp.ne.s32.totalorder %s63, %s79
    %p81 = scmp.eq.s32.totalorder %s17, 0
    %p82 = por %p80, %p81
    %s83 = ssub.s32 %s19, %s26
    %p84 = scmp.eq.s32.totalorder %s83, 0
    %s86 = sadd.s32 %s85, 1
    %s87 = scalar_select %p84, %s85, %s86
    %p90 = pneg %p84
    %p91 = scmp.eq.s32.totalorder %s11, 1
    %p92 = por %p90, %p91
    %p93 = scmp.ne.s32.totalorder %s85, %s88
    %p94 = scmp.eq.s32.totalorder %s11, 0
    %p95 = por %p93, %p94
    %p96 = scmp.ne.s32.totalorder %s85, %s88
    %p97 = scmp.eq.s32.totalorder %s16, 1
    %p98 = por %p96, %p97
    %p99 = scmp.ne.s32.totalorder %s88, %s89
    %p100 = scmp.eq.s32.totalorder %s16, 0
    %p101 = por %p99, %p100
    %p102 = scmp.ne.s32.totalorder %s88, %s89
    %p103 = scmp.eq.s32.totalorder %s17, 1
    %p104 = por %p102, %p103
    %p106 = scmp.ne.s32.totalorder %s89, %s105
    %p107 = scmp.eq.s32.totalorder %s17, 0
    %p108 = por %p106, %p107
    %s109 = ssub.s32 %s19, %s26
    %p110 = scmp.eq.s32.totalorder %s109, 0
    %s112 = sadd.s32 %s111, 1
    %s113 = scalar_select %p110, %s111, %s112
    %p116 = pneg %p110
    %p117 = scmp.eq.s32.totalorder %s11, 1
    %p118 = por %p116, %p117
    %p119 = scmp.ne.s32.totalorder %s111, %s114
    %p120 = scmp.eq.s32.totalorder %s11, 0
    %p121 = por %p119, %p120
    %p122 = scmp.ne.s32.totalorder %s111, %s114
    %p123 = scmp.eq.s32.totalorder %s16, 1
    %p124 = por %p122, %p123
    %p125 = scmp.ne.s32.totalorder %s114, %s115
    %p126 = scmp.eq.s32.totalorder %s16, 0
    %p127 = por %p125, %p126
    %p128 = scmp.ne.s32.totalorder %s114, %s115
    %p129 = scmp.eq.s32.totalorder %s17, 1
    %p130 = por %p128, %p129
    %p132 = scmp.ne.s32.totalorder %s115, %s131
    %p133 = scmp.eq.s32.totalorder %s17, 0
    %p134 = por %p132, %p133
    %s135 = ssub.s32 %s19, %s26
    %p136 = scmp.eq.s32.totalorder %s135, 0
    %s138 = sadd.s32 %s137, 1
    %s139 = scalar_select %p136, %s137, %s138
    %p142 = pneg %p136
    %p143 = scmp.eq.s32.totalorder %s11, 1
    %p144 = por %p142, %p143
    %p145 = scmp.ne.s32.totalorder %s137, %s140
    %p146 = scmp.eq.s32.totalorder %s11, 0
    %p147 = por %p145, %p146
    %p148 = scmp.ne.s32.totalorder %s137, %s140
    %p149 = scmp.eq.s32.totalorder %s16, 1
    %p150 = por %p148, %p149
    %p151 = scmp.ne.s32.totalorder %s140, %s141
    %p152 = scmp.eq.s32.totalorder %s16, 0
    %p153 = por %p151, %p152
    %p154 = scmp.ne.s32.totalorder %s140, %s141
    %p155 = scmp.eq.s32.totalorder %s17, 1
    %p156 = por %p154, %p155
    %p158 = scmp.ne.s32.totalorder %s141, %s157
    %p159 = scmp.eq.s32.totalorder %s17, 0
    %p160 = por %p158, %p159
    %s161 = ssub.s32 %s18, %s30
    %s162 = ssub.s32 %s19, %s26
    %s163 = sor.u32 %s161, %s162
    %p164 = scmp.eq.s32.totalorder %s163, 0
    %s166 = sadd.s32 %s165, 1
    %s167 = scalar_select %p164, %s165, %s166
    %p170 = pneg %p164
    %p171 = scmp.eq.s32.totalorder %s11, 1
    %p172 = por %p170, %p171
    %p173 = scmp.ne.s32.totalorder %s165, %s168
    %p174 = scmp.eq.s32.totalorder %s11, 0
    %p175 = por %p173, %p174
    %p176 = scmp.ne.s32.totalorder %s165, %s168
    %p177 = scmp.eq.s32.totalorder %s16, 1
    %p178 = por %p176, %p177
    %p179 = scmp.ne.s32.totalorder %s168, %s169
    %p180 = scmp.eq.s32.totalorder %s16, 0
    %p181 = por %p179, %p180
    %p182 = scmp.ne.s32.totalorder %s168, %s169
    %p183 = scmp.eq.s32.totalorder %s17, 1
    %p184 = por %p182, %p183
    %p186 = scmp.ne.s32.totalorder %s169, %s185
    %p187 = scmp.eq.s32.totalorder %s17, 0
    %p188 = por %p186, %p187
    %p189 = scmp.le.s32.totalorder 1, %s11
    %p190 = scmp.lt.s32.totalorder %s11, 3
    %p191 = pnand %p189, %p190
    %p192 = pneg %p191
    // Predicated region
    $region9: #{light_conv_forward.1} parent=5 // pred_check
      _
    $region10: #{light_conv_forward.1} parent=5 // pred_check_branch
      %194 = sbr.rel (%p191) target = $region12
    $region11: #{light_conv_forward.1} parent=5 // pred_region
      %s195 = ssub.s32 %s11, 1
      // Predicated region
      $region13: #{light_conv_forward.1} parent=11 // pred_check
        %p196 = pneg %p75
      $region14: #{light_conv_forward.1} parent=11 // pred_check_branch
        %198 = sbr.rel (%p196) target = $region16
      $region15: #{light_conv_forward.1} parent=11 // pred_region
        %p199 = scmp.lt.s32.totalorder %s21, 0
        %s200 = scalar_select %p199, %s21, 0
        %s201 = smul.addr %s200, 4
        %s202 = scalar_lea.vmem %s1, %s201
      $region16: #{light_conv_forward.1} parent=11 // pred_fallthru
        _
      // Predicated region
      $region17: #{light_conv_forward.1} parent=11 // pred_check
        %p203 = pneg %p101
      $region18: #{light_conv_forward.1} parent=11 // pred_check_branch
        %205 = sbr.rel (%p203) target = $region20
      $region19: #{light_conv_forward.1} parent=11 // pred_region
        %p206 = scmp.lt.s32.totalorder %s21, 0
        %s207 = scalar_select %p206, %s21, 0
        %s208 = scalar_lea.vmem %s2, %s207
      $region20: #{light_conv_forward.1} parent=11 // pred_fallthru
        _
      // Predicated region
      $region21: #{light_conv_forward.1} parent=11 // pred_check
        %p209 = pneg %p127
      $region22: #{light_conv_forward.1} parent=11 // pred_check_branch
        %211 = sbr.rel (%p209) target = $region24
      $region23: #{light_conv_forward.1} parent=11 // pred_region
        %p212 = scmp.lt.s32.totalorder %s21, 0
        %s213 = scalar_select %p212, %s21, 0
        %s214 = smul.addr %s213, 4
        %s215 = scalar_lea.vmem %s3, %s214
      $region24: #{light_conv_forward.1} parent=11 // pred_fallthru
        _
      // Predicated region
      $region25: #{light_conv_forward.1} parent=11 // pred_check
        %p216 = pneg %p153
      $region26: #{light_conv_forward.1} parent=11 // pred_check_branch
        %218 = sbr.rel (%p216) target = $region28
      $region27: #{light_conv_forward.1} parent=11 // pred_region
        %p219 = scmp.lt.s32.totalorder %s21, 0
        %s220 = scalar_select %p219, %s21, 0
        %s221 = scalar_lea.vmem %s4, %s220
      $region28: #{light_conv_forward.1} parent=11 // pred_fallthru
        _
    $region12: #{light_conv_forward.1} parent=5 // pred_fallthru
      _
    %p222 = scmp.lt.s32.totalorder %s11, 2
    // Predicated region
    $region29: #{light_conv_forward.1} parent=5 // pred_check
      %p223 = pneg %p222
    $region30: #{light_conv_forward.1} parent=5 // pred_check_branch
      %225 = sbr.rel (%p223) target = $region32
    $region31: #{light_conv_forward.1} parent=5 // pred_region
      // Predicated region
      $region33: #{light_conv_forward.1} parent=31 // pred_check
        %p226 = pneg %p43
      $region34: #{light_conv_forward.1} parent=31 // pred_check_branch
        %228 = sbr.rel (%p226) target = $region36
      $region35: #{light_conv_forward.1} parent=31 // pred_region
        %p229 = scmp.lt.s32.totalorder %s18, 1
        %s230 = scalar_select %p229, %s18, 1
        %s231 = smul.addr %s230, 32
        %s232 = smul.addr %s231, 8
        %s233 = scalar_lea.vmem %s0, %s232
      $region36: #{light_conv_forward.1} parent=31 // pred_fallthru
        _
    $region32: #{light_conv_forward.1} parent=5 // pred_fallthru
      _
    %p234 = scmp.le.s32.totalorder 1, %s11
    %p235 = scmp.lt.s32.totalorder %s11, 3
    %p236 = pnand %p234, %p235
    %p237 = pneg %p236
    // Predicated region
    $region37: #{light_conv_forward.1} parent=5 // pred_check
      _
    $region38: #{light_conv_forward.1} parent=5 // pred_check_branch
      %239 = sbr.rel (%p236) target = $region40
    $region39: #{light_conv_forward.1} parent=5 // pred_region
      %s240 = ssub.s32 %s11, 1
      %p241 = scmp.lt.s32.totalorder %s20, 1
      %s242 = scalar_select %p241, %s20, 1
      %s243 = smul.addr %s242, 32
      %s244 = smul.addr %s243, 8
      %s245 = scalar_lea.vmem %s0, %s244
      %p246 = pneg %p49
      %p247 = pneg %p46
      %p248 = scmp.lt.s32.totalorder %s21, 0
      %s249 = scalar_select %p248, %s21, 0
      %s250 = smul.addr %s249, 4
      %s251 = scalar_lea.vmem %s1, %s250
      %p252 = pneg %p75
      %p253 = pneg %p72
      %p254 = scmp.lt.s32.totalorder %s21, 0
      %s255 = scalar_select %p254, %s21, 0
      %s256 = scalar_lea.vmem %s2, %s255
      %p257 = pneg %p101
      %p258 = pneg %p98
      %p259 = scmp.lt.s32.totalorder %s21, 0
      %s260 = scalar_select %p259, %s21, 0
      %s261 = smul.addr %s260, 4
      %s262 = scalar_lea.vmem %s3, %s261
      %p263 = pneg %p127
      %p264 = pneg %p124
      %p265 = scmp.lt.s32.totalorder %s21, 0
      %s266 = scalar_select %p265, %s21, 0
      %s267 = scalar_lea.vmem %s4, %s266
      %p268 = pneg %p153
      %p269 = pneg %p150
      %p270 = pneg %p181
      %p271 = pneg %p178
      %p272 = scmp.lt.s32.totalorder %s20, 1
      %s273 = scalar_select %p272, %s20, 1
      %p274 = scmp.lt.s32.totalorder %s21, 0
      %s275 = scalar_select %p274, %s21, 0
      %s276 = smul.addr %s273, 32
      %s277 = sadd.s32 %s275, %s276
      %s278 = smul.addr %s277, 8
      %s279 = scalar_lea.vmem %s5, %s278
      %p280 = scmp.lt.s32.totalorder %s20, 1
      %s281 = scalar_select %p280, %s20, 1
      %s282 = smul.addr %s281, 32
      %s283 = smul.addr %s282, 8
      %s284 = scalar_lea.vmem %s0, %s283
      %p285 = scmp.lt.s32.totalorder %s21, 0
      %s286 = scalar_select %p285, %s21, 0
      %s287 = smul.addr %s286, 4
      %s288 = scalar_lea.vmem %s1, %s287
      %p289 = scmp.lt.s32.totalorder %s21, 0
      %s290 = scalar_select %p289, %s21, 0
      %s291 = scalar_lea.vmem %s2, %s290
      %p292 = scmp.lt.s32.totalorder %s21, 0
      %s293 = scalar_select %p292, %s21, 0
      %s294 = smul.addr %s293, 4
      %s295 = scalar_lea.vmem %s3, %s294
      %p296 = scmp.lt.s32.totalorder %s21, 0
      %s297 = scalar_select %p296, %s21, 0
      %s298 = scalar_lea.vmem %s4, %s297
      %p299 = scmp.lt.s32.totalorder %s20, 1
      %s300 = scalar_select %p299, %s20, 1
      %p301 = scmp.lt.s32.totalorder %s21, 0
      %s302 = scalar_select %p301, %s21, 0
      %s303 = smul.addr %s300, 32
      %s304 = sadd.s32 %s302, %s303
      %s305 = smul.addr %s304, 8
      %s306 = scalar_lea.vmem %s5, %s305
      %v307 = vld [vmem:[%s284] sm:$0xff]
      %v308 = vld [vmem:[%s284 + $0x8] sm:$0xff]
      %v309 = vld [vmem:[%s284 + $0x10] sm:$0xff]
      %v310 = vld [vmem:[%s284 + $0x18] sm:$0xff]
      %v311 = vld [vmem:[%s284 + $0x20] sm:$0xff]
      %v312 = vld [vmem:[%s284 + $0x28] sm:$0xff]
      %v313 = vld [vmem:[%s284 + $0x30] sm:$0xff]
      %v314 = vld [vmem:[%s284 + $0x38] sm:$0xff]
      %v315 = vld [vmem:[%s284 + $0x40] sm:$0xff]
      %v316 = vld [vmem:[%s284 + $0x48] sm:$0xff]
      %v317 = vld [vmem:[%s284 + $0x50] sm:$0xff]
      %v318 = vld [vmem:[%s284 + $0x58] sm:$0xff]
      %v319 = vld [vmem:[%s284 + $0x60] sm:$0xff]
      %v320 = vld [vmem:[%s284 + $0x68] sm:$0xff]
      %v321 = vld [vmem:[%s284 + $0x70] sm:$0xff]
      %v322 = vld [vmem:[%s284 + $0x78] sm:$0xff]
      %v323 = vld [vmem:[%s284 + $0x80] sm:$0xff]
      %v324 = vld [vmem:[%s284 + $0x88] sm:$0xff]
      %v325 = vld [vmem:[%s284 + $0x90] sm:$0xff]
      %v326 = vld [vmem:[%s284 + $0x98] sm:$0xff]
      %v327 = vld [vmem:[%s284 + $0xa0] sm:$0xff]
      %v328 = vld [vmem:[%s284 + $0xa8] sm:$0xff]
      %v329 = vld [vmem:[%s284 + $0xb0] sm:$0xff]
      %v330 = vld [vmem:[%s284 + $0xb8] sm:$0xff]
      %v331 = vld [vmem:[%s284 + $0xc0] sm:$0xff]
      %v332 = vld [vmem:[%s284 + $0xc8] sm:$0xff]
      %v333 = vld [vmem:[%s284 + $0xd0] sm:$0xff]
      %v334 = vld [vmem:[%s284 + $0xd8] sm:$0xff]
      %v335 = vld [vmem:[%s284 + $0xe0] sm:$0xff]
      %v336 = vld [vmem:[%s284 + $0xe8] sm:$0xff]
      %v337 = vld [vmem:[%s284 + $0xf0] sm:$0xff]
      %v338 = vld [vmem:[%s284 + $0xf8] sm:$0xff]
      %v339 = vld [vmem:[%s288] sm:$0xf]
      %v340 = vld [vmem:[%s291] sm:$0x1]
      %v342 = vperm.slane %v340, 0
      %vm344 = vcmask 31744
      %v346 = vsel %vm344, %v307, 0
      %v349 = vsel %vm344, %v308, 0
      %v352 = vsel %vm344, %v309, 0
      %v355 = vsel %vm344, %v310, 0
      %v358 = vsel %vm344, %v311, 0
      %v361 = vsel %vm344, %v312, 0
      %v364 = vsel %vm344, %v313, 0
      %v367 = vsel %vm344, %v314, 0
      %v370 = vsel %vm344, %v315, 0
      %v373 = vsel %vm344, %v316, 0
      %v376 = vsel %vm344, %v317, 0
      %v379 = vsel %vm344, %v318, 0
      %v382 = vsel %vm344, %v319, 0
      %v385 = vsel %vm344, %v320, 0
      %v388 = vsel %vm344, %v321, 0
      %v391 = vsel %vm344, %v322, 0
      %v394 = vsel %vm344, %v323, 0
      %v397 = vsel %vm344, %v324, 0
      %v400 = vsel %vm344, %v325, 0
      %v403 = vsel %vm344, %v326, 0
      %v406 = vsel %vm344, %v327, 0
      %v409 = vsel %vm344, %v328, 0
      %v412 = vsel %vm344, %v329, 0
      %v415 = vsel %vm344, %v330, 0
      %v418 = vsel %vm344, %v331, 0
      %v421 = vsel %vm344, %v332, 0
      %v424 = vsel %vm344, %v333, 0
      %v427 = vsel %vm344, %v334, 0
      %v430 = vsel %vm344, %v335, 0
      %v433 = vsel %vm344, %v336, 0
      %v436 = vsel %vm344, %v337, 0
      %v439 = vsel %vm344, %v338, 0
      %vm441 = vcmask 1043456
      %v443 = vsel %vm441, %v339, 0
      %445 = vmatpush.msra.mxu0 0.0
      %446 = vmatpush.msra.mxu0 0.0
      %447 = vmatpush.msra.mxu0 0.0
      %448 = vmatpush.msra.mxu0 0.0
      %449 = vmatpush.msra.mxu0 0.0
      %450 = vmatpush.msra.mxu0 0.0
      %451 = vmatpush.msra.mxu0 0.0
      %452 = vmatpush.msra.mxu0 0.0
      %453 = vmatpush.msra.mxu0 0.0
      %454 = vmatpush.msra.mxu0 0.0
      %455 = vmatpush.msra.mxu0 0.0
      %456 = vmatpush.msra.mxu0 0.0
      %457 = vmatpush.msra.mxu0 0.0
      %458 = vmatpush.msra.mxu0 0.0
      %459 = vmatpush.msra.mxu0 0.0
      %460 = vmatpush.msra.mxu0 %v443
      %461 = vmatmul.f32.gmra.mxu0 %v346
      %v462 = vpop.f32.mrf.mxu0
      %v463 = vadd.f32 %v342, %v462
      %464 = vmatmul.f32.gmra.mxu0 %v349
      %v465 = vpop.f32.mrf.mxu0
      %v466 = vadd.f32 %v342, %v465
      %467 = vmatmul.f32.gmra.mxu0 %v352
      %v468 = vpop.f32.mrf.mxu0
      %v469 = vadd.f32 %v342, %v468
      %470 = vmatmul.f32.gmra.mxu0 %v355
      %v471 = vpop.f32.mrf.mxu0
      %v472 = vadd.f32 %v342, %v471
      %473 = vmatmul.f32.gmra.mxu0 %v358
      %v474 = vpop.f32.mrf.mxu0
      %v475 = vadd.f32 %v342, %v474
      %476 = vmatmul.f32.gmra.mxu0 %v361
      %v477 = vpop.f32.mrf.mxu0
      %v478 = vadd.f32 %v342, %v477
      %479 = vmatmul.f32.gmra.mxu0 %v364
      %v480 = vpop.f32.mrf.mxu0
      %v481 = vadd.f32 %v342, %v480
      %482 = vmatmul.f32.gmra.mxu0 %v367
      %v483 = vpop.f32.mrf.mxu0
      %v484 = vadd.f32 %v342, %v483
      %485 = vmatmul.f32.gmra.mxu0 %v370
      %v486 = vpop.f32.mrf.mxu0
      %v487 = vadd.f32 %v342, %v486
      %488 = vmatmul.f32.gmra.mxu0 %v373
      %v489 = vpop.f32.mrf.mxu0
      %v490 = vadd.f32 %v342, %v489
      %491 = vmatmul.f32.gmra.mxu0 %v376
      %v492 = vpop.f32.mrf.mxu0
      %v493 = vadd.f32 %v342, %v492
      %494 = vmatmul.f32.gmra.mxu0 %v379
      %v495 = vpop.f32.mrf.mxu0
      %v496 = vadd.f32 %v342, %v495
      %497 = vmatmul.f32.gmra.mxu0 %v382
      %v498 = vpop.f32.mrf.mxu0
      %v499 = vadd.f32 %v342, %v498
      %500 = vmatmul.f32.gmra.mxu0 %v385
      %v501 = vpop.f32.mrf.mxu0
      %v502 = vadd.f32 %v342, %v501
      %503 = vmatmul.f32.gmra.mxu0 %v388
      %v504 = vpop.f32.mrf.mxu0
      %v505 = vadd.f32 %v342, %v504
      %506 = vmatmul.f32.gmra.mxu0 %v391
      %v507 = vpop.f32.mrf.mxu0
      %v508 = vadd.f32 %v342, %v507
      %509 = vmatmul.f32.gmra.mxu0 %v394
      %v510 = vpop.f32.mrf.mxu0
      %v511 = vadd.f32 %v342, %v510
      %512 = vmatmul.f32.gmra.mxu0 %v397
      %v513 = vpop.f32.mrf.mxu0
      %v514 = vadd.f32 %v342, %v513
      %515 = vmatmul.f32.gmra.mxu0 %v400
      %v516 = vpop.f32.mrf.mxu0
      %v517 = vadd.f32 %v342, %v516
      %518 = vmatmul.f32.gmra.mxu0 %v403
      %v519 = vpop.f32.mrf.mxu0
      %v520 = vadd.f32 %v342, %v519
      %521 = vmatmul.f32.gmra.mxu0 %v406
      %v522 = vpop.f32.mrf.mxu0
      %v523 = vadd.f32 %v342, %v522
      %524 = vmatmul.f32.gmra.mxu0 %v409
      %v525 = vpop.f32.mrf.mxu0
      %v526 = vadd.f32 %v342, %v525
      %527 = vmatmul.f32.gmra.mxu0 %v412
      %v528 = vpop.f32.mrf.mxu0
      %v529 = vadd.f32 %v342, %v528
      %530 = vmatmul.f32.gmra.mxu0 %v415
      %v531 = vpop.f32.mrf.mxu0
      %v532 = vadd.f32 %v342, %v531
      %533 = vmatmul.f32.gmra.mxu0 %v418
      %v534 = vpop.f32.mrf.mxu0
      %v535 = vadd.f32 %v342, %v534
      %536 = vmatmul.f32.gmra.mxu0 %v421
      %v537 = vpop.f32.mrf.mxu0
      %v538 = vadd.f32 %v342, %v537
      %539 = vmatmul.f32.gmra.mxu0 %v424
      %v540 = vpop.f32.mrf.mxu0
      %v541 = vadd.f32 %v342, %v540
      %542 = vmatmul.f32.gmra.mxu0 %v427
      %v543 = vpop.f32.mrf.mxu0
      %v544 = vadd.f32 %v342, %v543
      %545 = vmatmul.f32.gmra.mxu0 %v430
      %v546 = vpop.f32.mrf.mxu0
      %v547 = vadd.f32 %v342, %v546
      %548 = vmatmul.f32.gmra.mxu0 %v433
      %v549 = vpop.f32.mrf.mxu0
      %v550 = vadd.f32 %v342, %v549
      %551 = vmatmul.f32.gmra.mxu0 %v436
      %v552 = vpop.f32.mrf.mxu0
      %v553 = vadd.f32 %v342, %v552
      %554 = vmatmul.f32.gmra.mxu0 %v439
      %v555 = vpop.f32.mrf.mxu0
      %v556 = vadd.f32 %v342, %v555
      %557 = vdwg.mxu0
      %vm558 = vcmask 64512
      %559 = vst.msk [vmem:[#allocation2] sm:$0xff] %vm558, 0.0
      %560 = vst.msk [vmem:[#allocation2 + $0x8] sm:$0xff] %vm558, 0.0
      %s561 = scalar_lea.vmem [#allocation2], 272
      %562 = vst.msk [vmem:[%s561] sm:$0xff] %vm558, 0.0
      %563 = vst.msk [vmem:[%s561 + $0x8] sm:$0xff] %vm558, 0.0
      %s564 = scalar_lea.vmem [#allocation2], 16
      %565 = vst.msk [vmem:[%s564] sm:$0xff] %vm558, %v463
      %566 = vst.msk [vmem:[%s564 + $0x8] sm:$0xff] %vm558, %v466
      %567 = vst.msk [vmem:[%s564 + $0x10] sm:$0xff] %vm558, %v469
      %568 = vst.msk [vmem:[%s564 + $0x18] sm:$0xff] %vm558, %v472
      %569 = vst.msk [vmem:[%s564 + $0x20] sm:$0xff] %vm558, %v475
      %570 = vst.msk [vmem:[%s564 + $0x28] sm:$0xff] %vm558, %v478
      %571 = vst.msk [vmem:[%s564 + $0x30] sm:$0xff] %vm558, %v481
      %572 = vst.msk [vmem:[%s564 + $0x38] sm:$0xff] %vm558, %v484
      %573 = vst.msk [vmem:[%s564 + $0x40] sm:$0xff] %vm558, %v487
      %574 = vst.msk [vmem:[%s564 + $0x48] sm:$0xff] %vm558, %v490
      %575 = vst.msk [vmem:[%s564 + $0x50] sm:$0xff] %vm558, %v493
      %576 = vst.msk [vmem:[%s564 + $0x58] sm:$0xff] %vm558, %v496
      %577 = vst.msk [vmem:[%s564 + $0x60] sm:$0xff] %vm558, %v499
      %578 = vst.msk [vmem:[%s564 + $0x68] sm:$0xff] %vm558, %v502
      %579 = vst.msk [vmem:[%s564 + $0x70] sm:$0xff] %vm558, %v505
      %580 = vst.msk [vmem:[%s564 + $0x78] sm:$0xff] %vm558, %v508
      %581 = vst.msk [vmem:[%s564 + $0x80] sm:$0xff] %vm558, %v511
      %582 = vst.msk [vmem:[%s564 + $0x88] sm:$0xff] %vm558, %v514
      %583 = vst.msk [vmem:[%s564 + $0x90] sm:$0xff] %vm558, %v517
      %584 = vst.msk [vmem:[%s564 + $0x98] sm:$0xff] %vm558, %v520
      %585 = vst.msk [vmem:[%s564 + $0xa0] sm:$0xff] %vm558, %v523
      %586 = vst.msk [vmem:[%s564 + $0xa8] sm:$0xff] %vm558, %v526
      %587 = vst.msk [vmem:[%s564 + $0xb0] sm:$0xff] %vm558, %v529
      %588 = vst.msk [vmem:[%s564 + $0xb8] sm:$0xff] %vm558, %v532
      %589 = vst.msk [vmem:[%s564 + $0xc0] sm:$0xff] %vm558, %v535
      %590 = vst.msk [vmem:[%s564 + $0xc8] sm:$0xff] %vm558, %v538
      %591 = vst.msk [vmem:[%s564 + $0xd0] sm:$0xff] %vm558, %v541
      %592 = vst.msk [vmem:[%s564 + $0xd8] sm:$0xff] %vm558, %v544
      %593 = vst.msk [vmem:[%s564 + $0xe0] sm:$0xff] %vm558, %v547
      %594 = vst.msk [vmem:[%s564 + $0xe8] sm:$0xff] %vm558, %v550
      %595 = vst.msk [vmem:[%s564 + $0xf0] sm:$0xff] %vm558, %v553
      %596 = vst.msk [vmem:[%s564 + $0xf8] sm:$0xff] %vm558, %v556
      %v597 = vld [vmem:[#allocation2] sm:$0xff]
      %v598 = vld [vmem:[#allocation2 + $0x8] sm:$0xff]
      %v599 = vld [vmem:[#allocation2 + $0x10] sm:$0xff]
      %v600 = vld [vmem:[#allocation2 + $0x18] sm:$0xff]
      %v601 = vld [vmem:[#allocation2 + $0x20] sm:$0xff]
      %v602 = vld [vmem:[#allocation2 + $0x28] sm:$0xff]
      %v603 = vld [vmem:[#allocation2 + $0x30] sm:$0xff]
      %v604 = vld [vmem:[#allocation2 + $0x38] sm:$0xff]
      %v605 = vld [vmem:[#allocation2 + $0x40] sm:$0xff]
      %v606 = vld [vmem:[#allocation2 + $0x48] sm:$0xff]
      %v607 = vld [vmem:[#allocation2 + $0x50] sm:$0xff]
      %v608 = vld [vmem:[#allocation2 + $0x58] sm:$0xff]
      %v609 = vld [vmem:[#allocation2 + $0x60] sm:$0xff]
      %v610 = vld [vmem:[#allocation2 + $0x68] sm:$0xff]
      %v611 = vld [vmem:[#allocation2 + $0x70] sm:$0xff]
      %v612 = vld [vmem:[#allocation2 + $0x78] sm:$0xff]
      %v613 = vld [vmem:[#allocation2 + $0x80] sm:$0xff]
      %v614 = vld [vmem:[#allocation2 + $0x88] sm:$0xff]
      %v615 = vld [vmem:[#allocation2 + $0x90] sm:$0xff]
      %v616 = vld [vmem:[#allocation2 + $0x98] sm:$0xff]
      %v617 = vld [vmem:[#allocation2 + $0xa0] sm:$0xff]
      %v618 = vld [vmem:[#allocation2 + $0xa8] sm:$0xff]
      %v619 = vld [vmem:[#allocation2 + $0xb0] sm:$0xff]
      %v620 = vld [vmem:[#allocation2 + $0xb8] sm:$0xff]
      %v621 = vld [vmem:[#allocation2 + $0xc0] sm:$0xff]
      %v622 = vld [vmem:[#allocation2 + $0xc8] sm:$0xff]
      %v623 = vld [vmem:[#allocation2 + $0xd0] sm:$0xff]
      %v624 = vld [vmem:[#allocation2 + $0xd8] sm:$0xff]
      %v625 = vld [vmem:[#allocation2 + $0xe0] sm:$0xff]
      %v626 = vld [vmem:[#allocation2 + $0xe8] sm:$0xff]
      %v627 = vld [vmem:[#allocation2 + $0xf0] sm:$0xff]
      %v628 = vld [vmem:[#allocation2 + $0xf8] sm:$0xff]
      %v629 = vld [vmem:[%s564] sm:$0xff]
      %v630 = vld [vmem:[%s564 + $0x8] sm:$0xff]
      %v631 = vld [vmem:[%s564 + $0x10] sm:$0xff]
      %v632 = vld [vmem:[%s564 + $0x18] sm:$0xff]
      %v633 = vld [vmem:[%s564 + $0x20] sm:$0xff]
      %v634 = vld [vmem:[%s564 + $0x28] sm:$0xff]
      %v635 = vld [vmem:[%s564 + $0x30] sm:$0xff]
      %v636 = vld [vmem:[%s564 + $0x38] sm:$0xff]
      %v637 = vld [vmem:[%s564 + $0x40] sm:$0xff]
      %v638 = vld [vmem:[%s564 + $0x48] sm:$0xff]
      %v639 = vld [vmem:[%s564 + $0x50] sm:$0xff]
      %v640 = vld [vmem:[%s564 + $0x58] sm:$0xff]
      %v641 = vld [vmem:[%s564 + $0x60] sm:$0xff]
      %v642 = vld [vmem:[%s564 + $0x68] sm:$0xff]
      %v643 = vld [vmem:[%s564 + $0x70] sm:$0xff]
      %v644 = vld [vmem:[%s564 + $0x78] sm:$0xff]
      %v645 = vld [vmem:[%s564 + $0x80] sm:$0xff]
      %v646 = vld [vmem:[%s564 + $0x88] sm:$0xff]
      %v647 = vld [vmem:[%s564 + $0x90] sm:$0xff]
      %v648 = vld [vmem:[%s564 + $0x98] sm:$0xff]
      %v649 = vld [vmem:[%s564 + $0xa0] sm:$0xff]
      %v650 = vld [vmem:[%s564 + $0xa8] sm:$0xff]
      %v651 = vld [vmem:[%s564 + $0xb0] sm:$0xff]
      %v652 = vld [vmem:[%s564 + $0xb8] sm:$0xff]
      %v653 = vld [vmem:[%s564 + $0xc0] sm:$0xff]
      %v654 = vld [vmem:[%s564 + $0xc8] sm:$0xff]
      %v655 = vld [vmem:[%s564 + $0xd0] sm:$0xff]
      %v656 = vld [vmem:[%s564 + $0xd8] sm:$0xff]
      %v657 = vld [vmem:[%s564 + $0xe0] sm:$0xff]
      %v658 = vld [vmem:[%s564 + $0xe8] sm:$0xff]
      %v659 = vld [vmem:[%s564 + $0xf0] sm:$0xff]
      %v660 = vld [vmem:[%s564 + $0xf8] sm:$0xff]
      %s661 = scalar_lea.vmem [#allocation2], 32
      %v662 = vld [vmem:[%s661] sm:$0xff]
      %v663 = vld [vmem:[%s661 + $0x8] sm:$0xff]
      %v664 = vld [vmem:[%s661 + $0x10] sm:$0xff]
      %v665 = vld [vmem:[%s661 + $0x18] sm:$0xff]
      %v666 = vld [vmem:[%s661 + $0x20] sm:$0xff]
      %v667 = vld [vmem:[%s661 + $0x28] sm:$0xff]
      %v668 = vld [vmem:[%s661 + $0x30] sm:$0xff]
      %v669 = vld [vmem:[%s661 + $0x38] sm:$0xff]
      %v670 = vld [vmem:[%s661 + $0x40] sm:$0xff]
      %v671 = vld [vmem:[%s661 + $0x48] sm:$0xff]
      %v672 = vld [vmem:[%s661 + $0x50] sm:$0xff]
      %v673 = vld [vmem:[%s661 + $0x58] sm:$0xff]
      %v674 = vld [vmem:[%s661 + $0x60] sm:$0xff]
      %v675 = vld [vmem:[%s661 + $0x68] sm:$0xff]
      %v676 = vld [vmem:[%s661 + $0x70] sm:$0xff]
      %v677 = vld [vmem:[%s661 + $0x78] sm:$0xff]
      %v678 = vld [vmem:[%s661 + $0x80] sm:$0xff]
      %v679 = vld [vmem:[%s661 + $0x88] sm:$0xff]
      %v680 = vld [vmem:[%s661 + $0x90] sm:$0xff]
      %v681 = vld [vmem:[%s661 + $0x98] sm:$0xff]
      %v682 = vld [vmem:[%s661 + $0xa0] sm:$0xff]
      %v683 = vld [vmem:[%s661 + $0xa8] sm:$0xff]
      %v684 = vld [vmem:[%s661 + $0xb0] sm:$0xff]
      %v685 = vld [vmem:[%s661 + $0xb8] sm:$0xff]
      %v686 = vld [vmem:[%s661 + $0xc0] sm:$0xff]
      %v687 = vld [vmem:[%s661 + $0xc8] sm:$0xff]
      %v688 = vld [vmem:[%s661 + $0xd0] sm:$0xff]
      %v689 = vld [vmem:[%s661 + $0xd8] sm:$0xff]
      %v690 = vld [vmem:[%s661 + $0xe0] sm:$0xff]
      %v691 = vld [vmem:[%s661 + $0xe8] sm:$0xff]
      %v692 = vld [vmem:[%s661 + $0xf0] sm:$0xff]
      %v693 = vld [vmem:[%s661 + $0xf8] sm:$0xff]
      %v694 = vld [vmem:[%s295] sm:$0x1]
      %v695 = vperm.slane %v694, 0
      %v696 = vmul.f32 %v597, %v695
      %v697 = vmul.f32 %v598, %v695
      %v698 = vmul.f32 %v599, %v695
      %v699 = vmul.f32 %v600, %v695
      %v700 = vmul.f32 %v601, %v695
      %v701 = vmul.f32 %v602, %v695
      %v702 = vmul.f32 %v603, %v695
      %v703 = vmul.f32 %v604, %v695
      %v704 = vmul.f32 %v605, %v695
      %v705 = vmul.f32 %v606, %v695
      %v706 = vmul.f32 %v607, %v695
      %v707 = vmul.f32 %v608, %v695
      %v708 = vmul.f32 %v609, %v695
      %v709 = vmul.f32 %v610, %v695
      %v710 = vmul.f32 %v611, %v695
      %v711 = vmul.f32 %v612, %v695
      %v712 = vmul.f32 %v613, %v695
      %v713 = vmul.f32 %v614, %v695
      %v714 = vmul.f32 %v615, %v695
      %v715 = vmul.f32 %v616, %v695
      %v716 = vmul.f32 %v617, %v695
      %v717 = vmul.f32 %v618, %v695
      %v718 = vmul.f32 %v619, %v695
      %v719 = vmul.f32 %v620, %v695
      %v720 = vmul.f32 %v621, %v695
      %v721 = vmul.f32 %v622, %v695
      %v722 = vmul.f32 %v623, %v695
      %v723 = vmul.f32 %v624, %v695
      %v724 = vmul.f32 %v625, %v695
      %v725 = vmul.f32 %v626, %v695
      %v726 = vmul.f32 %v627, %v695
      %v727 = vmul.f32 %v628, %v695
      %s728 = scalar_lea.vmem %s295, 4
      %v729 = vld [vmem:[%s728] sm:$0x1]
      %v730 = vperm.slane %v729, 0
      %v731 = vmul.f32 %v629, %v730
      %v732 = vmul.f32 %v630, %v730
      %v733 = vmul.f32 %v631, %v730
      %v734 = vmul.f32 %v632, %v730
      %v735 = vmul.f32 %v633, %v730
      %v736 = vmul.f32 %v634, %v730
      %v737 = vmul.f32 %v635, %v730
      %v738 = vmul.f32 %v636, %v730
      %v739 = vmul.f32 %v637, %v730
      %v740 = vmul.f32 %v638, %v730
      %v741 = vmul.f32 %v639, %v730
      %v742 = vmul.f32 %v640, %v730
      %v743 = vmul.f32 %v641, %v730
      %v744 = vmul.f32 %v642, %v730
      %v745 = vmul.f32 %v643, %v730
      %v746 = vmul.f32 %v644, %v730
      %v747 = vmul.f32 %v645, %v730
      %v748 = vmul.f32 %v646, %v730
      %v749 = vmul.f32 %v647, %v730
      %v750 = vmul.f32 %v648, %v730
      %v751 = vmul.f32 %v649, %v730
      %v752 = vmul.f32 %v650, %v730
      %v753 = vmul.f32 %v651, %v730
      %v754 = vmul.f32 %v652, %v730
      %v755 = vmul.f32 %v653, %v730
      %v756 = vmul.f32 %v654, %v730
      %v757 = vmul.f32 %v655, %v730
      %v758 = vmul.f32 %v656, %v730
      %v759 = vmul.f32 %v657, %v730
      %v760 = vmul.f32 %v658, %v730
      %v761 = vmul.f32 %v659, %v730
      %v762 = vmul.f32 %v660, %v730
      %v763 = vadd.f32 %v696, %v731
      %v764 = vadd.f32 %v697, %v732
      %v765 = vadd.f32 %v698, %v733
      %v766 = vadd.f32 %v699, %v734
      %v767 = vadd.f32 %v700, %v735
      %v768 = vadd.f32 %v701, %v736
      %v769 = vadd.f32 %v702, %v737
      %v770 = vadd.f32 %v703, %v738
      %v771 = vadd.f32 %v704, %v739
      %v772 = vadd.f32 %v705, %v740
      %v773 = vadd.f32 %v706, %v741
      %v774 = vadd.f32 %v707, %v742
      %v775 = vadd.f32 %v708, %v743
      %v776 = vadd.f32 %v709, %v744
      %v777 = vadd.f32 %v710, %v745
      %v778 = vadd.f32 %v711, %v746
      %v779 = vadd.f32 %v712, %v747
      %v780 = vadd.f32 %v713, %v748
      %v781 = vadd.f32 %v714, %v749
      %v782 = vadd.f32 %v715, %v750
      %v783 = vadd.f32 %v716, %v751
      %v784 = vadd.f32 %v717, %v752
      %v785 = vadd.f32 %v718, %v753
      %v786 = vadd.f32 %v719, %v754
      %v787 = vadd.f32 %v720, %v755
      %v788 = vadd.f32 %v721, %v756
      %v789 = vadd.f32 %v722, %v757
      %v790 = vadd.f32 %v723, %v758
      %v791 = vadd.f32 %v724, %v759
      %v792 = vadd.f32 %v725, %v760
      %v793 = vadd.f32 %v726, %v761
      %v794 = vadd.f32 %v727, %v762
      %s795 = scalar_lea.vmem %s295, 8
      %v796 = vld [vmem:[%s795] sm:$0x1]
      %v797 = vperm.slane %v796, 0
      %v798 = vmul.f32 %v662, %v797
      %v799 = vmul.f32 %v663, %v797
      %v800 = vmul.f32 %v664, %v797
      %v801 = vmul.f32 %v665, %v797
      %v802 = vmul.f32 %v666, %v797
      %v803 = vmul.f32 %v667, %v797
      %v804 = vmul.f32 %v668, %v797
      %v805 = vmul.f32 %v669, %v797
      %v806 = vmul.f32 %v670, %v797
      %v807 = vmul.f32 %v671, %v797
      %v808 = vmul.f32 %v672, %v797
      %v809 = vmul.f32 %v673, %v797
      %v810 = vmul.f32 %v674, %v797
      %v811 = vmul.f32 %v675, %v797
      %v812 = vmul.f32 %v676, %v797
      %v813 = vmul.f32 %v677, %v797
      %v814 = vmul.f32 %v678, %v797
      %v815 = vmul.f32 %v679, %v797
      %v816 = vmul.f32 %v680, %v797
      %v817 = vmul.f32 %v681, %v797
      %v818 = vmul.f32 %v682, %v797
      %v819 = vmul.f32 %v683, %v797
      %v820 = vmul.f32 %v684, %v797
      %v821 = vmul.f32 %v685, %v797
      %v822 = vmul.f32 %v686, %v797
      %v823 = vmul.f32 %v687, %v797
      %v824 = vmul.f32 %v688, %v797
      %v825 = vmul.f32 %v689, %v797
      %v826 = vmul.f32 %v690, %v797
      %v827 = vmul.f32 %v691, %v797
      %v828 = vmul.f32 %v692, %v797
      %v829 = vmul.f32 %v693, %v797
      %v830 = vadd.f32 %v763, %v798
      %v831 = vadd.f32 %v764, %v799
      %v832 = vadd.f32 %v765, %v800
      %v833 = vadd.f32 %v766, %v801
      %v834 = vadd.f32 %v767, %v802
      %v835 = vadd.f32 %v768, %v803
      %v836 = vadd.f32 %v769, %v804
      %v837 = vadd.f32 %v770, %v805
      %v838 = vadd.f32 %v771, %v806
      %v839 = vadd.f32 %v772, %v807
      %v840 = vadd.f32 %v773, %v808
      %v841 = vadd.f32 %v774, %v809
      %v842 = vadd.f32 %v775, %v810
      %v843 = vadd.f32 %v776, %v811
      %v844 = vadd.f32 %v777, %v812
      %v845 = vadd.f32 %v778, %v813
      %v846 = vadd.f32 %v779, %v814
      %v847 = vadd.f32 %v780, %v815
      %v848 = vadd.f32 %v781, %v816
      %v849 = vadd.f32 %v782, %v817
      %v850 = vadd.f32 %v783, %v818
      %v851 = vadd.f32 %v784, %v819
      %v852 = vadd.f32 %v785, %v820
      %v853 = vadd.f32 %v786, %v821
      %v854 = vadd.f32 %v787, %v822
      %v855 = vadd.f32 %v788, %v823
      %v856 = vadd.f32 %v789, %v824
      %v857 = vadd.f32 %v790, %v825
      %v858 = vadd.f32 %v791, %v826
      %v859 = vadd.f32 %v792, %v827
      %v860 = vadd.f32 %v793, %v828
      %v861 = vadd.f32 %v794, %v829
      %vm894 = vcmask 1040384
      %v895 = vrot.slane %v830, 7
      %v896 = vrot.slane %v831, 7
      %v897 = vsel %vm894, %v895, %v896
      %v898 = vrot.slane %v832, 7
      %v899 = vrot.slane %v833, 7
      %v900 = vsel %vm894, %v898, %v899
      %v901 = vrot.slane %v834, 7
      %v902 = vrot.slane %v835, 7
      %v903 = vsel %vm894, %v901, %v902
      %v904 = vrot.slane %v836, 7
      %v905 = vrot.slane %v837, 7
      %v906 = vsel %vm894, %v904, %v905
      %v907 = vrot.slane %v838, 7
      %v908 = vrot.slane %v839, 7
      %v909 = vsel %vm894, %v907, %v908
      %v910 = vrot.slane %v840, 7
      %v911 = vrot.slane %v841, 7
      %v912 = vsel %vm894, %v910, %v911
      %v913 = vrot.slane %v842, 7
      %v914 = vrot.slane %v843, 7
      %v915 = vsel %vm894, %v913, %v914
      %v916 = vrot.slane %v844, 7
      %v917 = vrot.slane %v845, 7
      %v918 = vsel %vm894, %v916, %v917
      %v919 = vrot.slane %v846, 7
      %v920 = vrot.slane %v847, 7
      %v921 = vsel %vm894, %v919, %v920
      %v922 = vrot.slane %v848, 7
      %v923 = vrot.slane %v849, 7
      %v924 = vsel %vm894, %v922, %v923
      %v925 = vrot.slane %v850, 7
      %v926 = vrot.slane %v851, 7
      %v927 = vsel %vm894, %v925, %v926
      %v928 = vrot.slane %v852, 7
      %v929 = vrot.slane %v853, 7
      %v930 = vsel %vm894, %v928, %v929
      %v931 = vrot.slane %v854, 7
      %v932 = vrot.slane %v855, 7
      %v933 = vsel %vm894, %v931, %v932
      %v934 = vrot.slane %v856, 7
      %v935 = vrot.slane %v857, 7
      %v936 = vsel %vm894, %v934, %v935
      %v937 = vrot.slane %v858, 7
      %v938 = vrot.slane %v859, 7
      %v939 = vsel %vm894, %v937, %v938
      %v940 = vrot.slane %v860, 7
      %v941 = vrot.slane %v861, 7
      %v942 = vsel %vm894, %v940, %v941
      %v975 = vsel %vm894, 0.0, %v895
      %v976 = vsel %vm894, 0.0, %v898
      %v977 = vsel %vm894, 0.0, %v901
      %v978 = vsel %vm894, 0.0, %v904
      %v979 = vsel %vm894, 0.0, %v907
      %v980 = vsel %vm894, 0.0, %v910
      %v981 = vsel %vm894, 0.0, %v913
      %v982 = vsel %vm894, 0.0, %v916
      %v983 = vsel %vm894, 0.0, %v919
      %v984 = vsel %vm894, 0.0, %v922
      %v985 = vsel %vm894, 0.0, %v925
      %v986 = vsel %vm894, 0.0, %v928
      %v987 = vsel %vm894, 0.0, %v931
      %v988 = vsel %vm894, 0.0, %v934
      %v989 = vsel %vm894, 0.0, %v937
      %v990 = vsel %vm894, 0.0, %v940
      %v991 = vld [vmem:[%s295 + $0x1] sm:$0x1]
      %v992 = vperm.slane %v991, 0
      %v993 = vmul.f32 %v597, %v992
      %v994 = vmul.f32 %v598, %v992
      %v995 = vmul.f32 %v599, %v992
      %v996 = vmul.f32 %v600, %v992
      %v997 = vmul.f32 %v601, %v992
      %v998 = vmul.f32 %v602, %v992
      %v999 = vmul.f32 %v603, %v992
      %v1000 = vmul.f32 %v604, %v992
      %v1001 = vmul.f32 %v605, %v992
      %v1002 = vmul.f32 %v606, %v992
      %v1003 = vmul.f32 %v607, %v992
      %v1004 = vmul.f32 %v608, %v992
      %v1005 = vmul.f32 %v609, %v992
      %v1006 = vmul.f32 %v610, %v992
      %v1007 = vmul.f32 %v611, %v992
      %v1008 = vmul.f32 %v612, %v992
      %v1009 = vmul.f32 %v613, %v992
      %v1010 = vmul.f32 %v614, %v992
      %v1011 = vmul.f32 %v615, %v992
      %v1012 = vmul.f32 %v616, %v992
      %v1013 = vmul.f32 %v617, %v992
      %v1014 = vmul.f32 %v618, %v992
      %v1015 = vmul.f32 %v619, %v992
      %v1016 = vmul.f32 %v620, %v992
      %v1017 = vmul.f32 %v621, %v992
      %v1018 = vmul.f32 %v622, %v992
      %v1019 = vmul.f32 %v623, %v992
      %v1020 = vmul.f32 %v624, %v992
      %v1021 = vmul.f32 %v625, %v992
      %v1022 = vmul.f32 %v626, %v992
      %v1023 = vmul.f32 %v627, %v992
      %v1024 = vmul.f32 %v628, %v992
      %v1025 = vld [vmem:[%s728 + $0x1] sm:$0x1]
      %v1026 = vperm.slane %v1025, 0
      %v1027 = vmul.f32 %v629, %v1026
      %v1028 = vmul.f32 %v630, %v1026
      %v1029 = vmul.f32 %v631, %v1026
      %v1030 = vmul.f32 %v632, %v1026
      %v1031 = vmul.f32 %v633, %v1026
      %v1032 = vmul.f32 %v634, %v1026
      %v1033 = vmul.f32 %v635, %v1026
      %v1034 = vmul.f32 %v636, %v1026
      %v1035 = vmul.f32 %v637, %v1026
      %v1036 = vmul.f32 %v638, %v1026
      %v1037 = vmul.f32 %v639, %v1026
      %v1038 = vmul.f32 %v640, %v1026
      %v1039 = vmul.f32 %v641, %v1026
      %v1040 = vmul.f32 %v642, %v1026
      %v1041 = vmul.f32 %v643, %v1026
      %v1042 = vmul.f32 %v644, %v1026
      %v1043 = vmul.f32 %v645, %v1026
      %v1044 = vmul.f32 %v646, %v1026
      %v1045 = vmul.f32 %v647, %v1026
      %v1046 = vmul.f32 %v648, %v1026
      %v1047 = vmul.f32 %v649, %v1026
      %v1048 = vmul.f32 %v650, %v1026
      %v1049 = vmul.f32 %v651, %v1026
      %v1050 = vmul.f32 %v652, %v1026
      %v1051 = vmul.f32 %v653, %v1026
      %v1052 = vmul.f32 %v654, %v1026
      %v1053 = vmul.f32 %v655, %v1026
      %v1054 = vmul.f32 %v656, %v1026
      %v1055 = vmul.f32 %v657, %v1026
      %v1056 = vmul.f32 %v658, %v1026
      %v1057 = vmul.f32 %v659, %v1026
      %v1058 = vmul.f32 %v660, %v1026
      %v1059 = vadd.f32 %v993, %v1027
      %v1060 = vadd.f32 %v994, %v1028
      %v1061 = vadd.f32 %v995, %v1029
      %v1062 = vadd.f32 %v996, %v1030
      %v1063 = vadd.f32 %v997, %v1031
      %v1064 = vadd.f32 %v998, %v1032
      %v1065 = vadd.f32 %v999, %v1033
      %v1066 = vadd.f32 %v1000, %v1034
      %v1067 = vadd.f32 %v1001, %v1035
      %v1068 = vadd.f32 %v1002, %v1036
      %v1069 = vadd.f32 %v1003, %v1037
      %v1070 = vadd.f32 %v1004, %v1038
      %v1071 = vadd.f32 %v1005, %v1039
      %v1072 = vadd.f32 %v1006, %v1040
      %v1073 = vadd.f32 %v1007, %v1041
      %v1074 = vadd.f32 %v1008, %v1042
      %v1075 = vadd.f32 %v1009, %v1043
      %v1076 = vadd.f32 %v1010, %v1044
      %v1077 = vadd.f32 %v1011, %v1045
      %v1078 = vadd.f32 %v1012, %v1046
      %v1079 = vadd.f32 %v1013, %v1047
      %v1080 = vadd.f32 %v1014, %v1048
      %v1081 = vadd.f32 %v1015, %v1049
      %v1082 = vadd.f32 %v1016, %v1050
      %v1083 = vadd.f32 %v1017, %v1051
      %v1084 = vadd.f32 %v1018, %v1052
      %v1085 = vadd.f32 %v1019, %v1053
      %v1086 = vadd.f32 %v1020, %v1054
      %v1087 = vadd.f32 %v1021, %v1055
      %v1088 = vadd.f32 %v1022, %v1056
      %v1089 = vadd.f32 %v1023, %v1057
      %v1090 = vadd.f32 %v1024, %v1058
      %v1091 = vld [vmem:[%s795 + $0x1] sm:$0x1]
      %v1092 = vperm.slane %v1091, 0
      %v1093 = vmul.f32 %v662, %v1092
      %v1094 = vmul.f32 %v663, %v1092
      %v1095 = vmul.f32 %v664, %v1092
      %v1096 = vmul.f32 %v665, %v1092
      %v1097 = vmul.f32 %v666, %v1092
      %v1098 = vmul.f32 %v667, %v1092
      %v1099 = vmul.f32 %v668, %v1092
      %v1100 = vmul.f32 %v669, %v1092
      %v1101 = vmul.f32 %v670, %v1092
      %v1102 = vmul.f32 %v671, %v1092
      %v1103 = vmul.f32 %v672, %v1092
      %v1104 = vmul.f32 %v673, %v1092
      %v1105 = vmul.f32 %v674, %v1092
      %v1106 = vmul.f32 %v675, %v1092
      %v1107 = vmul.f32 %v676, %v1092
      %v1108 = vmul.f32 %v677, %v1092
      %v1109 = vmul.f32 %v678, %v1092
      %v1110 = vmul.f32 %v679, %v1092
      %v1111 = vmul.f32 %v680, %v1092
      %v1112 = vmul.f32 %v681, %v1092
      %v1113 = vmul.f32 %v682, %v1092
      %v1114 = vmul.f32 %v683, %v1092
      %v1115 = vmul.f32 %v684, %v1092
      %v1116 = vmul.f32 %v685, %v1092
      %v1117 = vmul.f32 %v686, %v1092
      %v1118 = vmul.f32 %v687, %v1092
      %v1119 = vmul.f32 %v688, %v1092
      %v1120 = vmul.f32 %v689, %v1092
      %v1121 = vmul.f32 %v690, %v1092
      %v1122 = vmul.f32 %v691, %v1092
      %v1123 = vmul.f32 %v692, %v1092
      %v1124 = vmul.f32 %v693, %v1092
      %v1125 = vadd.f32 %v1059, %v1093
      %v1126 = vadd.f32 %v1060, %v1094
      %v1127 = vadd.f32 %v1061, %v1095
      %v1128 = vadd.f32 %v1062, %v1096
      %v1129 = vadd.f32 %v1063, %v1097
      %v1130 = vadd.f32 %v1064, %v1098
      %v1131 = vadd.f32 %v1065, %v1099
      %v1132 = vadd.f32 %v1066, %v1100
      %v1133 = vadd.f32 %v1067, %v1101
      %v1134 = vadd.f32 %v1068, %v1102
      %v1135 = vadd.f32 %v1069, %v1103
      %v1136 = vadd.f32 %v1070, %v1104
      %v1137 = vadd.f32 %v1071, %v1105
      %v1138 = vadd.f32 %v1072, %v1106
      %v1139 = vadd.f32 %v1073, %v1107
      %v1140 = vadd.f32 %v1074, %v1108
      %v1141 = vadd.f32 %v1075, %v1109
      %v1142 = vadd.f32 %v1076, %v1110
      %v1143 = vadd.f32 %v1077, %v1111
      %v1144 = vadd.f32 %v1078, %v1112
      %v1145 = vadd.f32 %v1079, %v1113
      %v1146 = vadd.f32 %v1080, %v1114
      %v1147 = vadd.f32 %v1081, %v1115
      %v1148 = vadd.f32 %v1082, %v1116
      %v1149 = vadd.f32 %v1083, %v1117
      %v1150 = vadd.f32 %v1084, %v1118
      %v1151 = vadd.f32 %v1085, %v1119
      %v1152 = vadd.f32 %v1086, %v1120
      %v1153 = vadd.f32 %v1087, %v1121
      %v1154 = vadd.f32 %v1088, %v1122
      %v1155 = vadd.f32 %v1089, %v1123
      %v1156 = vadd.f32 %v1090, %v1124
      %v1157 = vadd.f32 %v975, %v1125
      %v1158 = vadd.f32 %v897, %v1126
      %v1159 = vadd.f32 %v976, %v1127
      %v1160 = vadd.f32 %v900, %v1128
      %v1161 = vadd.f32 %v977, %v1129
      %v1162 = vadd.f32 %v903, %v1130
      %v1163 = vadd.f32 %v978, %v1131
      %v1164 = vadd.f32 %v906, %v1132
      %v1165 = vadd.f32 %v979, %v1133
      %v1166 = vadd.f32 %v909, %v1134
      %v1167 = vadd.f32 %v980, %v1135
      %v1168 = vadd.f32 %v912, %v1136
      %v1169 = vadd.f32 %v981, %v1137
      %v1170 = vadd.f32 %v915, %v1138
      %v1171 = vadd.f32 %v982, %v1139
      %v1172 = vadd.f32 %v918, %v1140
      %v1173 = vadd.f32 %v983, %v1141
      %v1174 = vadd.f32 %v921, %v1142
      %v1175 = vadd.f32 %v984, %v1143
      %v1176 = vadd.f32 %v924, %v1144
      %v1177 = vadd.f32 %v985, %v1145
      %v1178 = vadd.f32 %v927, %v1146
      %v1179 = vadd.f32 %v986, %v1147
      %v1180 = vadd.f32 %v930, %v1148
      %v1181 = vadd.f32 %v987, %v1149
      %v1182 = vadd.f32 %v933, %v1150
      %v1183 = vadd.f32 %v988, %v1151
      %v1184 = vadd.f32 %v936, %v1152
      %v1185 = vadd.f32 %v989, %v1153
      %v1186 = vadd.f32 %v939, %v1154
      %v1187 = vadd.f32 %v990, %v1155
      %v1188 = vadd.f32 %v942, %v1156
      %v1189 = vld [vmem:[%s295 + $0x2] sm:$0x1]
      %v1190 = vperm.slane %v1189, 0
      %v1191 = vmul.f32 %v597, %v1190
      %v1192 = vmul.f32 %v598, %v1190
      %v1193 = vmul.f32 %v599, %v1190
      %v1194 = vmul.f32 %v600, %v1190
      %v1195 = vmul.f32 %v601, %v1190
      %v1196 = vmul.f32 %v602, %v1190
      %v1197 = vmul.f32 %v603, %v1190
      %v1198 = vmul.f32 %v604, %v1190
      %v1199 = vmul.f32 %v605, %v1190
      %v1200 = vmul.f32 %v606, %v1190
      %v1201 = vmul.f32 %v607, %v1190
      %v1202 = vmul.f32 %v608, %v1190
      %v1203 = vmul.f32 %v609, %v1190
      %v1204 = vmul.f32 %v610, %v1190
      %v1205 = vmul.f32 %v611, %v1190
      %v1206 = vmul.f32 %v612, %v1190
      %v1207 = vmul.f32 %v613, %v1190
      %v1208 = vmul.f32 %v614, %v1190
      %v1209 = vmul.f32 %v615, %v1190
      %v1210 = vmul.f32 %v616, %v1190
      %v1211 = vmul.f32 %v617, %v1190
      %v1212 = vmul.f32 %v618, %v1190
      %v1213 = vmul.f32 %v619, %v1190
      %v1214 = vmul.f32 %v620, %v1190
      %v1215 = vmul.f32 %v621, %v1190
      %v1216 = vmul.f32 %v622, %v1190
      %v1217 = vmul.f32 %v623, %v1190
      %v1218 = vmul.f32 %v624, %v1190
      %v1219 = vmul.f32 %v625, %v1190
      %v1220 = vmul.f32 %v626, %v1190
      %v1221 = vmul.f32 %v627, %v1190
      %v1222 = vmul.f32 %v628, %v1190
      %v1223 = vld [vmem:[%s728 + $0x2] sm:$0x1]
      %v1224 = vperm.slane %v1223, 0
      %v1225 = vmul.f32 %v629, %v1224
      %v1226 = vmul.f32 %v630, %v1224
      %v1227 = vmul.f32 %v631, %v1224
      %v1228 = vmul.f32 %v632, %v1224
      %v1229 = vmul.f32 %v633, %v1224
      %v1230 = vmul.f32 %v634, %v1224
      %v1231 = vmul.f32 %v635, %v1224
      %v1232 = vmul.f32 %v636, %v1224
      %v1233 = vmul.f32 %v637, %v1224
      %v1234 = vmul.f32 %v638, %v1224
      %v1235 = vmul.f32 %v639, %v1224
      %v1236 = vmul.f32 %v640, %v1224
      %v1237 = vmul.f32 %v641, %v1224
      %v1238 = vmul.f32 %v642, %v1224
      %v1239 = vmul.f32 %v643, %v1224
      %v1240 = vmul.f32 %v644, %v1224
      %v1241 = vmul.f32 %v645, %v1224
      %v1242 = vmul.f32 %v646, %v1224
      %v1243 = vmul.f32 %v647, %v1224
      %v1244 = vmul.f32 %v648, %v1224
      %v1245 = vmul.f32 %v649, %v1224
      %v1246 = vmul.f32 %v650, %v1224
      %v1247 = vmul.f32 %v651, %v1224
      %v1248 = vmul.f32 %v652, %v1224
      %v1249 = vmul.f32 %v653, %v1224
      %v1250 = vmul.f32 %v654, %v1224
      %v1251 = vmul.f32 %v655, %v1224
      %v1252 = vmul.f32 %v656, %v1224
      %v1253 = vmul.f32 %v657, %v1224
      %v1254 = vmul.f32 %v658, %v1224
      %v1255 = vmul.f32 %v659, %v1224
      %v1256 = vmul.f32 %v660, %v1224
      %v1257 = vadd.f32 %v1191, %v1225
      %v1258 = vadd.f32 %v1192, %v1226
      %v1259 = vadd.f32 %v1193, %v1227
      %v1260 = vadd.f32 %v1194, %v1228
      %v1261 = vadd.f32 %v1195, %v1229
      %v1262 = vadd.f32 %v1196, %v1230
      %v1263 = vadd.f32 %v1197, %v1231
      %v1264 = vadd.f32 %v1198, %v1232
      %v1265 = vadd.f32 %v1199, %v1233
      %v1266 = vadd.f32 %v1200, %v1234
      %v1267 = vadd.f32 %v1201, %v1235
      %v1268 = vadd.f32 %v1202, %v1236
      %v1269 = vadd.f32 %v1203, %v1237
      %v1270 = vadd.f32 %v1204, %v1238
      %v1271 = vadd.f32 %v1205, %v1239
      %v1272 = vadd.f32 %v1206, %v1240
      %v1273 = vadd.f32 %v1207, %v1241
      %v1274 = vadd.f32 %v1208, %v1242
      %v1275 = vadd.f32 %v1209, %v1243
      %v1276 = vadd.f32 %v1210, %v1244
      %v1277 = vadd.f32 %v1211, %v1245
      %v1278 = vadd.f32 %v1212, %v1246
      %v1279 = vadd.f32 %v1213, %v1247
      %v1280 = vadd.f32 %v1214, %v1248
      %v1281 = vadd.f32 %v1215, %v1249
      %v1282 = vadd.f32 %v1216, %v1250
      %v1283 = vadd.f32 %v1217, %v1251
      %v1284 = vadd.f32 %v1218, %v1252
      %v1285 = vadd.f32 %v1219, %v1253
      %v1286 = vadd.f32 %v1220, %v1254
      %v1287 = vadd.f32 %v1221, %v1255
      %v1288 = vadd.f32 %v1222, %v1256
      %v1289 = vld [vmem:[%s795 + $0x2] sm:$0x1]
      %v1290 = vperm.slane %v1289, 0
      %v1291 = vmul.f32 %v662, %v1290
      %v1292 = vmul.f32 %v663, %v1290
      %v1293 = vmul.f32 %v664, %v1290
      %v1294 = vmul.f32 %v665, %v1290
      %v1295 = vmul.f32 %v666, %v1290
      %v1296 = vmul.f32 %v667, %v1290
      %v1297 = vmul.f32 %v668, %v1290
      %v1298 = vmul.f32 %v669, %v1290
      %v1299 = vmul.f32 %v670, %v1290
      %v1300 = vmul.f32 %v671, %v1290
      %v1301 = vmul.f32 %v672, %v1290
      %v1302 = vmul.f32 %v673, %v1290
      %v1303 = vmul.f32 %v674, %v1290
      %v1304 = vmul.f32 %v675, %v1290
      %v1305 = vmul.f32 %v676, %v1290
      %v1306 = vmul.f32 %v677, %v1290
      %v1307 = vmul.f32 %v678, %v1290
      %v1308 = vmul.f32 %v679, %v1290
      %v1309 = vmul.f32 %v680, %v1290
      %v1310 = vmul.f32 %v681, %v1290
      %v1311 = vmul.f32 %v682, %v1290
      %v1312 = vmul.f32 %v683, %v1290
      %v1313 = vmul.f32 %v684, %v1290
      %v1314 = vmul.f32 %v685, %v1290
      %v1315 = vmul.f32 %v686, %v1290
      %v1316 = vmul.f32 %v687, %v1290
      %v1317 = vmul.f32 %v688, %v1290
      %v1318 = vmul.f32 %v689, %v1290
      %v1319 = vmul.f32 %v690, %v1290
      %v1320 = vmul.f32 %v691, %v1290
      %v1321 = vmul.f32 %v692, %v1290
      %v1322 = vmul.f32 %v693, %v1290
      %v1323 = vadd.f32 %v1257, %v1291
      %v1324 = vadd.f32 %v1258, %v1292
      %v1325 = vadd.f32 %v1259, %v1293
      %v1326 = vadd.f32 %v1260, %v1294
      %v1327 = vadd.f32 %v1261, %v1295
      %v1328 = vadd.f32 %v1262, %v1296
      %v1329 = vadd.f32 %v1263, %v1297
      %v1330 = vadd.f32 %v1264, %v1298
      %v1331 = vadd.f32 %v1265, %v1299
      %v1332 = vadd.f32 %v1266, %v1300
      %v1333 = vadd.f32 %v1267, %v1301
      %v1334 = vadd.f32 %v1268, %v1302
      %v1335 = vadd.f32 %v1269, %v1303
      %v1336 = vadd.f32 %v1270, %v1304
      %v1337 = vadd.f32 %v1271, %v1305
      %v1338 = vadd.f32 %v1272, %v1306
      %v1339 = vadd.f32 %v1273, %v1307
      %v1340 = vadd.f32 %v1274, %v1308
      %v1341 = vadd.f32 %v1275, %v1309
      %v1342 = vadd.f32 %v1276, %v1310
      %v1343 = vadd.f32 %v1277, %v1311
      %v1344 = vadd.f32 %v1278, %v1312
      %v1345 = vadd.f32 %v1279, %v1313
      %v1346 = vadd.f32 %v1280, %v1314
      %v1347 = vadd.f32 %v1281, %v1315
      %v1348 = vadd.f32 %v1282, %v1316
      %v1349 = vadd.f32 %v1283, %v1317
      %v1350 = vadd.f32 %v1284, %v1318
      %v1351 = vadd.f32 %v1285, %v1319
      %v1352 = vadd.f32 %v1286, %v1320
      %v1353 = vadd.f32 %v1287, %v1321
      %v1354 = vadd.f32 %v1288, %v1322
      %vm1387 = vcmask 1046528
      %v1388 = vrot.slane %v1323, 1
      %v1389 = vrot.slane %v1324, 1
      %v1390 = vsel %vm1387, %v1388, %v1389
      %v1391 = vrot.slane %v1325, 1
      %v1392 = vrot.slane %v1326, 1
      %v1393 = vsel %vm1387, %v1391, %v1392
      %v1394 = vrot.slane %v1327, 1
      %v1395 = vrot.slane %v1328, 1
      %v1396 = vsel %vm1387, %v1394, %v1395
      %v1397 = vrot.slane %v1329, 1
      %v1398 = vrot.slane %v1330, 1
      %v1399 = vsel %vm1387, %v1397, %v1398
      %v1400 = vrot.slane %v1331, 1
      %v1401 = vrot.slane %v1332, 1
      %v1402 = vsel %vm1387, %v1400, %v1401
      %v1403 = vrot.slane %v1333, 1
      %v1404 = vrot.slane %v1334, 1
      %v1405 = vsel %vm1387, %v1403, %v1404
      %v1406 = vrot.slane %v1335, 1
      %v1407 = vrot.slane %v1336, 1
      %v1408 = vsel %vm1387, %v1406, %v1407
      %v1409 = vrot.slane %v1337, 1
      %v1410 = vrot.slane %v1338, 1
      %v1411 = vsel %vm1387, %v1409, %v1410
      %v1412 = vrot.slane %v1339, 1
      %v1413 = vrot.slane %v1340, 1
      %v1414 = vsel %vm1387, %v1412, %v1413
      %v1415 = vrot.slane %v1341, 1
      %v1416 = vrot.slane %v1342, 1
      %v1417 = vsel %vm1387, %v1415, %v1416
      %v1418 = vrot.slane %v1343, 1
      %v1419 = vrot.slane %v1344, 1
      %v1420 = vsel %vm1387, %v1418, %v1419
      %v1421 = vrot.slane %v1345, 1
      %v1422 = vrot.slane %v1346, 1
      %v1423 = vsel %vm1387, %v1421, %v1422
      %v1424 = vrot.slane %v1347, 1
      %v1425 = vrot.slane %v1348, 1
      %v1426 = vsel %vm1387, %v1424, %v1425
      %v1427 = vrot.slane %v1349, 1
      %v1428 = vrot.slane %v1350, 1
      %v1429 = vsel %vm1387, %v1427, %v1428
      %v1430 = vrot.slane %v1351, 1
      %v1431 = vrot.slane %v1352, 1
      %v1432 = vsel %vm1387, %v1430, %v1431
      %v1433 = vrot.slane %v1353, 1
      %v1434 = vrot.slane %v1354, 1
      %v1435 = vsel %vm1387, %v1433, %v1434
      %v1468 = vsel %vm1387, %v1389, 0.0
      %v1469 = vsel %vm1387, %v1392, 0.0
      %v1470 = vsel %vm1387, %v1395, 0.0
      %v1471 = vsel %vm1387, %v1398, 0.0
      %v1472 = vsel %vm1387, %v1401, 0.0
      %v1473 = vsel %vm1387, %v1404, 0.0
      %v1474 = vsel %vm1387, %v1407, 0.0
      %v1475 = vsel %vm1387, %v1410, 0.0
      %v1476 = vsel %vm1387, %v1413, 0.0
      %v1477 = vsel %vm1387, %v1416, 0.0
      %v1478 = vsel %vm1387, %v1419, 0.0
      %v1479 = vsel %vm1387, %v1422, 0.0
      %v1480 = vsel %vm1387, %v1425, 0.0
      %v1481 = vsel %vm1387, %v1428, 0.0
      %v1482 = vsel %vm1387, %v1431, 0.0
      %v1483 = vsel %vm1387, %v1434, 0.0
      %v1484 = vadd.f32 %v1157, %v1390
      %v1485 = vadd.f32 %v1158, %v1468
      %v1486 = vadd.f32 %v1159, %v1393
      %v1487 = vadd.f32 %v1160, %v1469
      %v1488 = vadd.f32 %v1161, %v1396
      %v1489 = vadd.f32 %v1162, %v1470
      %v1490 = vadd.f32 %v1163, %v1399
      %v1491 = vadd.f32 %v1164, %v1471
      %v1492 = vadd.f32 %v1165, %v1402
      %v1493 = vadd.f32 %v1166, %v1472
      %v1494 = vadd.f32 %v1167, %v1405
      %v1495 = vadd.f32 %v1168, %v1473
      %v1496 = vadd.f32 %v1169, %v1408
      %v1497 = vadd.f32 %v1170, %v1474
      %v1498 = vadd.f32 %v1171, %v1411
      %v1499 = vadd.f32 %v1172, %v1475
      %v1500 = vadd.f32 %v1173, %v1414
      %v1501 = vadd.f32 %v1174, %v1476
      %v1502 = vadd.f32 %v1175, %v1417
      %v1503 = vadd.f32 %v1176, %v1477
      %v1504 = vadd.f32 %v1177, %v1420
      %v1505 = vadd.f32 %v1178, %v1478
      %v1506 = vadd.f32 %v1179, %v1423
      %v1507 = vadd.f32 %v1180, %v1479
      %v1508 = vadd.f32 %v1181, %v1426
      %v1509 = vadd.f32 %v1182, %v1480
      %v1510 = vadd.f32 %v1183, %v1429
      %v1511 = vadd.f32 %v1184, %v1481
      %v1512 = vadd.f32 %v1185, %v1432
      %v1513 = vadd.f32 %v1186, %v1482
      %v1514 = vadd.f32 %v1187, %v1435
      %v1515 = vadd.f32 %v1188, %v1483
      %v1516 = vld [vmem:[%s298] sm:$0x1]
      %v1518 = vperm.slane %v1516, 0
      %v1520 = vadd.f32 %v1484, %v1518
      %v1521 = vadd.f32 %v1485, %v1518
      %v1522 = vadd.f32 %v1486, %v1518
      %v1523 = vadd.f32 %v1487, %v1518
      %v1524 = vadd.f32 %v1488, %v1518
      %v1525 = vadd.f32 %v1489, %v1518
      %v1526 = vadd.f32 %v1490, %v1518
      %v1527 = vadd.f32 %v1491, %v1518
      %v1528 = vadd.f32 %v1492, %v1518
      %v1529 = vadd.f32 %v1493, %v1518
      %v1530 = vadd.f32 %v1494, %v1518
      %v1531 = vadd.f32 %v1495, %v1518
      %v1532 = vadd.f32 %v1496, %v1518
      %v1533 = vadd.f32 %v1497, %v1518
      %v1534 = vadd.f32 %v1498, %v1518
      %v1535 = vadd.f32 %v1499, %v1518
      %v1536 = vadd.f32 %v1500, %v1518
      %v1537 = vadd.f32 %v1501, %v1518
      %v1538 = vadd.f32 %v1502, %v1518
      %v1539 = vadd.f32 %v1503, %v1518
      %v1540 = vadd.f32 %v1504, %v1518
      %v1541 = vadd.f32 %v1505, %v1518
      %v1542 = vadd.f32 %v1506, %v1518
      %v1543 = vadd.f32 %v1507, %v1518
      %v1544 = vadd.f32 %v1508, %v1518
      %v1545 = vadd.f32 %v1509, %v1518
      %v1546 = vadd.f32 %v1510, %v1518
      %v1547 = vadd.f32 %v1511, %v1518
      %v1548 = vadd.f32 %v1512, %v1518
      %v1549 = vadd.f32 %v1513, %v1518
      %v1550 = vadd.f32 %v1514, %v1518
      %v1551 = vadd.f32 %v1515, %v1518
      %v1552 = vmax.f32 %v1520, 0.0
      %v1553 = vmax.f32 %v1521, 0.0
      %v1554 = vmax.f32 %v1522, 0.0
      %v1555 = vmax.f32 %v1523, 0.0
      %v1556 = vmax.f32 %v1524, 0.0
      %v1557 = vmax.f32 %v1525, 0.0
      %v1558 = vmax.f32 %v1526, 0.0
      %v1559 = vmax.f32 %v1527, 0.0
      %v1560 = vmax.f32 %v1528, 0.0
      %v1561 = vmax.f32 %v1529, 0.0
      %v1562 = vmax.f32 %v1530, 0.0
      %v1563 = vmax.f32 %v1531, 0.0
      %v1564 = vmax.f32 %v1532, 0.0
      %v1565 = vmax.f32 %v1533, 0.0
      %v1566 = vmax.f32 %v1534, 0.0
      %v1567 = vmax.f32 %v1535, 0.0
      %v1568 = vmax.f32 %v1536, 0.0
      %v1569 = vmax.f32 %v1537, 0.0
      %v1570 = vmax.f32 %v1538, 0.0
      %v1571 = vmax.f32 %v1539, 0.0
      %v1572 = vmax.f32 %v1540, 0.0
      %v1573 = vmax.f32 %v1541, 0.0
      %v1574 = vmax.f32 %v1542, 0.0
      %v1575 = vmax.f32 %v1543, 0.0
      %v1576 = vmax.f32 %v1544, 0.0
      %v1577 = vmax.f32 %v1545, 0.0
      %v1578 = vmax.f32 %v1546, 0.0
      %v1579 = vmax.f32 %v1547, 0.0
      %v1580 = vmax.f32 %v1548, 0.0
      %v1581 = vmax.f32 %v1549, 0.0
      %v1582 = vmax.f32 %v1550, 0.0
      %v1583 = vmax.f32 %v1551, 0.0
      %1584 = vst.msk [vmem:[%s306] sm:$0xff] %vm558, %v1552
      %1585 = vst.msk [vmem:[%s306 + $0x8] sm:$0xff] %vm558, %v1553
      %1586 = vst.msk [vmem:[%s306 + $0x10] sm:$0xff] %vm558, %v1554
      %1587 = vst.msk [vmem:[%s306 + $0x18] sm:$0xff] %vm558, %v1555
      %1588 = vst.msk [vmem:[%s306 + $0x20] sm:$0xff] %vm558, %v1556
      %1589 = vst.msk [vmem:[%s306 + $0x28] sm:$0xff] %vm558, %v1557
      %1590 = vst.msk [vmem:[%s306 + $0x30] sm:$0xff] %vm558, %v1558
      %1591 = vst.msk [vmem:[%s306 + $0x38] sm:$0xff] %vm558, %v1559
      %1592 = vst.msk [vmem:[%s306 + $0x40] sm:$0xff] %vm558, %v1560
      %1593 = vst.msk [vmem:[%s306 + $0x48] sm:$0xff] %vm558, %v1561
      %1594 = vst.msk [vmem:[%s306 + $0x50] sm:$0xff] %vm558, %v1562
      %1595 = vst.msk [vmem:[%s306 + $0x58] sm:$0xff] %vm558, %v1563
      %1596 = vst.msk [vmem:[%s306 + $0x60] sm:$0xff] %vm558, %v1564
      %1597 = vst.msk [vmem:[%s306 + $0x68] sm:$0xff] %vm558, %v1565
      %1598 = vst.msk [vmem:[%s306 + $0x70] sm:$0xff] %vm558, %v1566
      %1599 = vst.msk [vmem:[%s306 + $0x78] sm:$0xff] %vm558, %v1567
      %1600 = vst.msk [vmem:[%s306 + $0x80] sm:$0xff] %vm558, %v1568
      %1601 = vst.msk [vmem:[%s306 + $0x88] sm:$0xff] %vm558, %v1569
      %1602 = vst.msk [vmem:[%s306 + $0x90] sm:$0xff] %vm558, %v1570
      %1603 = vst.msk [vmem:[%s306 + $0x98] sm:$0xff] %vm558, %v1571
      %1604 = vst.msk [vmem:[%s306 + $0xa0] sm:$0xff] %vm558, %v1572
      %1605 = vst.msk [vmem:[%s306 + $0xa8] sm:$0xff] %vm558, %v1573
      %1606 = vst.msk [vmem:[%s306 + $0xb0] sm:$0xff] %vm558, %v1574
      %1607 = vst.msk [vmem:[%s306 + $0xb8] sm:$0xff] %vm558, %v1575
      %1608 = vst.msk [vmem:[%s306 + $0xc0] sm:$0xff] %vm558, %v1576
      %1609 = vst.msk [vmem:[%s306 + $0xc8] sm:$0xff] %vm558, %v1577
      %1610 = vst.msk [vmem:[%s306 + $0xd0] sm:$0xff] %vm558, %v1578
      %1611 = vst.msk [vmem:[%s306 + $0xd8] sm:$0xff] %vm558, %v1579
      %1612 = vst.msk [vmem:[%s306 + $0xe0] sm:$0xff] %vm558, %v1580
      %1613 = vst.msk [vmem:[%s306 + $0xe8] sm:$0xff] %vm558, %v1581
      %1614 = vst.msk [vmem:[%s306 + $0xf0] sm:$0xff] %vm558, %v1582
      %1615 = vst.msk [vmem:[%s306 + $0xf8] sm:$0xff] %vm558, %v1583
      %p1616 = scmp.lt.s32.totalorder %s20, 1
      %s1617 = scalar_select %p1616, %s20, 1
      %p1618 = scmp.lt.s32.totalorder %s21, 0
      %s1619 = scalar_select %p1618, %s21, 0
      %s1620 = smul.addr %s1617, 32
      %s1621 = sadd.s32 %s1619, %s1620
      %s1622 = smul.addr %s1621, 8
      %s1623 = scalar_lea.vmem %s5, %s1622
      // Predicated region
      $region41: #{light_conv_forward.1} parent=39 // pred_check
        %p1624 = pneg %p178
      $region42: #{light_conv_forward.1} parent=39 // pred_check_branch
        %1626 = sbr.rel (%p1624) target = $region44
      $region43: #{light_conv_forward.1} parent=39 // pred_region
        _
      $region44: #{light_conv_forward.1} parent=39 // pred_fallthru
        _
    $region40: #{light_conv_forward.1} parent=5 // pred_fallthru
      _
    %p1627 = scmp.le.s32.totalorder 2, %s11
    // Predicated region
    $region45: #{light_conv_forward.1} parent=5 // pred_check
      %p1628 = pneg %p1627
    $region46: #{light_conv_forward.1} parent=5 // pred_check_branch
      %1630 = sbr.rel (%p1628) target = $region48
    $region47: #{light_conv_forward.1} parent=5 // pred_region
      %s1631 = ssub.s32 %s11, 2
      // Predicated region
      $region49: #{light_conv_forward.1} parent=47 // pred_check
        %p1632 = pneg %p184
      $region50: #{light_conv_forward.1} parent=47 // pred_check_branch
        %1634 = sbr.rel (%p1632) target = $region52
      $region51: #{light_conv_forward.1} parent=47 // pred_region
        %p1635 = scmp.lt.s32.totalorder %s22, 1
        %s1636 = scalar_select %p1635, %s22, 1
        %p1637 = scmp.lt.s32.totalorder %s23, 0
        %s1638 = scalar_select %p1637, %s23, 0
        %s1639 = smul.addr %s1636, 32
        %s1640 = sadd.s32 %s1638, %s1639
        %s1641 = smul.addr %s1640, 8
        %s1642 = scalar_lea.vmem %s5, %s1641
      $region52: #{light_conv_forward.1} parent=47 // pred_fallthru
        _
    $region48: #{light_conv_forward.1} parent=5 // pred_fallthru
      _
  $region6: #{light_conv_forward.1} parent=0 // loop_footer
    %s15 = sadd.s32 1, %s11
  $region7: #{light_conv_forward.1} parent=0 // loop_footer_branch
    %10 = sbr.rel target = $region3
  $region8: #{light_conv_forward.1} parent=0 // loop_exit
    _

</llo_original>
